<compile_context>
chip_gen: v7x
topology: tpu7x:2x2x1
jax: 0.10.0
libtpu: 0.0.40
codegen_flags: <defaults>
</compile_context>

<pallas_src>
import functools
import numpy as np
import jax
import jax.numpy as jnp
from jax.experimental import pallas as pl
from jax.experimental.pallas import tpu as pltpu

PACK = 4          # rows packed per vreg row in the ResMLP kernel


def _round_up(a, b):
    return ((a + b - 1) // b) * b


# ---------------------------------------------------------------------------
# Pallas kernels
# ---------------------------------------------------------------------------
def _linear_kernel(x_ref, w_ref, b_ref, o_ref, *, relu):
    # x, w are bf16; accumulate f32 on the MXU; bias/ReLU in f32.
    acc = jnp.dot(x_ref[...], w_ref[...], preferred_element_type=jnp.float32)
    acc = acc + b_ref[...]
    if relu:
        acc = jnp.maximum(acc, 0.0)
    o_ref[...] = acc.astype(o_ref.dtype)


def pallas_linear(x, wp, bp, n_out, relu=False, tile_m=2048):
    """y = x @ wp + bp with pre-padded (K, Np) bf16 weight and (1, Np) f32 bias.

    Np is already a multiple of 128 (lane-dense stores); x is cast to bf16 here.
    """
    M, K = x.shape
    Np = wp.shape[1]
    tm = min(tile_m, _round_up(M, 8))
    Mp = _round_up(M, tm)
    xp = jnp.pad(x, ((0, Mp - M), (0, 0))).astype(jnp.bfloat16)
    out = pl.pallas_call(
        functools.partial(_linear_kernel, relu=relu),
        out_shape=jax.ShapeDtypeStruct((Mp, Np), jnp.float32),
        grid_spec=pltpu.PrefetchScalarGridSpec(
            num_scalar_prefetch=0,
            grid=(Mp // tm,),
            in_specs=[
                pl.BlockSpec((tm, K), lambda i: (i, 0)),
                pl.BlockSpec((K, Np), lambda i: (0, 0)),
                pl.BlockSpec((1, Np), lambda i: (0, 0)),
            ],
            out_specs=pl.BlockSpec((tm, Np), lambda i: (i, 0)),
        ),
        compiler_params=pltpu.CompilerParams(dimension_semantics=("parallel",)),
    )(xp, wp, bp)
    return out[:M, :n_out]


def _mlp2_kernel(x_ref, w1_ref, b1_ref, w2_ref, b2_ref, o_ref):
    h = jnp.dot(x_ref[...], w1_ref[...], preferred_element_type=jnp.float32) + b1_ref[...]
    h = jnp.maximum(h, 0.0)
    o = jnp.dot(h.astype(jnp.bfloat16), w2_ref[...],
                preferred_element_type=jnp.float32) + b2_ref[...]
    o_ref[...] = o.astype(o_ref.dtype)


def pallas_mlp2(x, w1p, b1p, w2p, b2p, n_out):
    """Fused fc1(ReLU)+fc2 in a single Pallas call (LeNet head); bf16 weights."""
    M, K = x.shape
    Hp = w1p.shape[1]
    Np = w2p.shape[1]
    Mp = _round_up(M, 8)
    xp = jnp.pad(x, ((0, Mp - M), (0, 0))).astype(jnp.bfloat16)
    out = pl.pallas_call(
        _mlp2_kernel,
        out_shape=jax.ShapeDtypeStruct((Mp, Np), jnp.float32),
        grid_spec=pltpu.PrefetchScalarGridSpec(
            num_scalar_prefetch=0,
            grid=(1,),
            in_specs=[
                pl.BlockSpec((Mp, K), lambda i: (0, 0)),
                pl.BlockSpec((K, Hp), lambda i: (0, 0)),
                pl.BlockSpec((1, Hp), lambda i: (0, 0)),
                pl.BlockSpec((Hp, Np), lambda i: (0, 0)),
                pl.BlockSpec((1, Np), lambda i: (0, 0)),
            ],
            out_specs=pl.BlockSpec((Mp, Np), lambda i: (0, 0)),
        ),
    )(xp, w1p, b1p, w2p, b2p)
    return out[:M, :n_out]


def _resmlp_kernel(x_ref, w_in_ref, b_in_ref, bn_s_ref, bn_t_ref,
                   w_blk_ref, b_blk_ref, w_out_ref, b_out_ref, o_ref, *, nblocks):
    # Packed layout: every row of the tile holds PACK independent samples, each
    # occupying a contiguous 32-lane (hidden) / 128-lane (output) block.  All
    # weights are block-diagonal so samples never mix.  Weights are bf16, the
    # running activation h and all BN/ReLU/residual math stay f32.
    h = jnp.dot(x_ref[...], w_in_ref[...], preferred_element_type=jnp.float32)
    h = jnp.maximum(h + b_in_ref[...], 0.0)
    # Residual blocks: BN -> ReLU -> Linear -> BN -> ReLU -> Linear, + skip
    for k in range(nblocks):
        z = h * bn_s_ref[2 * k] + bn_t_ref[2 * k]
        z = jnp.maximum(z, 0.0)
        z = jnp.dot(z.astype(jnp.bfloat16), w_blk_ref[2 * k],
                    preferred_element_type=jnp.float32) + b_blk_ref[2 * k]
        z = z * bn_s_ref[2 * k + 1] + bn_t_ref[2 * k + 1]
        z = jnp.maximum(z, 0.0)
        z = jnp.dot(z.astype(jnp.bfloat16), w_blk_ref[2 * k + 1],
                    preferred_element_type=jnp.float32) + b_blk_ref[2 * k + 1]
        h = h + z
    # Final_BN + relu_n + Out_layer
    z = h * bn_s_ref[2 * nblocks] + bn_t_ref[2 * nblocks]
    z = jnp.maximum(z, 0.0)
    out = jnp.dot(z.astype(jnp.bfloat16), w_out_ref[...],
                  preferred_element_type=jnp.float32) + b_out_ref[...]
    o_ref[...] = out.astype(o_ref.dtype)


def pallas_resmlp(x, rp, num_tiles=4):
    """Fused In_layer + ResBlocks + Final_BN + Out_layer, lane-packed 4 rows/vreg row.

    num_tiles=4 gives each v7x TensorCore two 'parallel' grid steps (so BlockSpec
    double-buffering can overlap output writeback / input DMA with compute) while
    each step still holds hundreds of packed rows (per-step overhead amortized).
    All weight prep (kron/pad/tile, bf16 cast) was done once in prepare_params().
    """
    M, K = x.shape                               # K == 4
    Kp = rp["w_in_bd"].shape[0] // PACK          # 8
    Hp = rp["w_in_bd"].shape[1]                  # 128
    G2p_packed = rp["w_out_bd"].shape[1]         # 512
    G2p = G2p_packed // PACK                     # 128
    G2 = rp["g2"]                                # 81
    nblocks = rp["nblocks"]
    NBN = rp["bn_s_bd"].shape[0]

    # packed rows per tile; multiple of 16 so bf16 input blocks are sublane-aligned
    rows_packed = _round_up(-(-M // (PACK * num_tiles)), 16)
    Mp = PACK * num_tiles * rows_packed
    xp = jnp.pad(x, ((0, Mp - M), (0, Kp - K)))
    x_packed = xp.reshape(Mp // PACK, PACK * Kp).astype(jnp.bfloat16)   # (rows, 32)

    out = pl.pallas_call(
        functools.partial(_resmlp_kernel, nblocks=nblocks),
        out_shape=jax.ShapeDtypeStruct((Mp // PACK, PACK * G2p), jnp.float32),
        grid_spec=pltpu.PrefetchScalarGridSpec(
            num_scalar_prefetch=0,
            grid=(num_tiles,),
            in_specs=[
                pl.BlockSpec((rows_packed, PACK * Kp), lambda i: (i, 0)),
                pl.BlockSpec((PACK * Kp, Hp), lambda i: (0, 0)),
                pl.BlockSpec((1, Hp), lambda i: (0, 0)),
                pl.BlockSpec((NBN, Hp), lambda i: (0, 0)),
                pl.BlockSpec((NBN, Hp), lambda i: (0, 0)),
                pl.BlockSpec((2 * nblocks, Hp, Hp), lambda i: (0, 0, 0)),
                pl.BlockSpec((2 * nblocks, Hp), lambda i: (0, 0)),
                pl.BlockSpec((Hp, PACK * G2p), lambda i: (0, 0)),
                pl.BlockSpec((1, PACK * G2p), lambda i: (0, 0)),
            ],
            out_specs=pl.BlockSpec((rows_packed, PACK * G2p), lambda i: (i, 0)),
        ),
        compiler_params=pltpu.CompilerParams(dimension_semantics=("parallel",)),
    )(x_packed, rp["w_in_bd"], rp["b_in_bd"], rp["bn_s_bd"], rp["bn_t_bd"],
      rp["w_blk_bd"], rp["b_blk_bd"], rp["w_out_bd"], rp["b_out_bd"])

    # (Mp/4, 4*128) is row-major contiguous with (Mp, 128): free unpack.
    out = out.reshape(Mp, G2p)
    return out[:M, :G2]


# ---------------------------------------------------------------------------
# DigitConv (LeNet) — conv via im2col (NHWC) + Pallas matmul
# ---------------------------------------------------------------------------
def _im2col_nhwc(x, kh, kw):
    N, H, W, C = x.shape
    oh, ow = H - kh + 1, W - kw + 1
    cols = [x[:, i:i + oh, j:j + ow, :] for i in range(kh) for j in range(kw)]
    patches = jnp.concatenate(cols, axis=-1)               # (N, oh, ow, kh*kw*C), (i,j,c) order
    return patches.reshape(N * oh * ow, kh * kw * C), oh, ow


def conv2d_relu_pallas(x, wp, bp, n_out, ksize, tile_m):
    """Stride-1, no-padding conv on NHWC input with fused ReLU.

    wp is the pre-built (kh*kw*C, Np) bf16 im2col weight matrix (row order (i,j,c)).
    """
    N = x.shape[0]
    cols, oh, ow = _im2col_nhwc(x, ksize, ksize)
    y = pallas_linear(cols, wp, bp, n_out, relu=True, tile_m=tile_m)
    return y.reshape(N, oh, ow, n_out)


def maxpool2x2_nhwc(x):
    N, H, W, C = x.shape
    return x.reshape(N, H // 2, 2, W // 2, 2, C).max(axis=(2, 4))


def digit_conv_forward(x, lp):
    if x.shape[-1] == 32:
        x = x[:, :, 2:-2, 2:-2]
    x = jnp.transpose(x, (0, 2, 3, 1))                     # NCHW -> NHWC once; stays NHWC
    x = conv2d_relu_pallas(x, lp["conv1_w"], lp["conv1_b"], lp["conv1_n"],
                           lp["conv1_k"], tile_m=2048)     # K=25: big tiles are cheap
    x = maxpool2x2_nhwc(x)
    x = conv2d_relu_pallas(x, lp["conv2_w"], lp["conv2_b"], lp["conv2_n"],
                           lp["conv2_k"], tile_m=1024)     # K=500: cap tile for v5e VMEM
    x = maxpool2x2_nhwc(x)
    x = x.reshape(x.shape[0], -1)                          # NHWC flatten (fc1_w pre-permuted)
    x = pallas_mlp2(x, lp["fc1_w"], lp["fc1_b"], lp["fc2_w"], lp["fc2_b"],
                    n_out=lp["fc2_n"])
    return x[:, :9]


# ---------------------------------------------------------------------------
# Net (pairwise embedding + ResMLP) and Visual_Net forward
# ---------------------------------------------------------------------------
def net_forward(x, resmlp_prep, grid_size):
    bs, nb_var, nb_ft = x.shape
    r_idx_np, c_idx_np = np.triu_indices(nb_var, k=1)      # host-side, static
    r_idx = jnp.asarray(r_idx_np)
    c_idx = jnp.asarray(c_idx_np)
    rr = jnp.stack([x[:, r_idx], x[:, c_idx]], axis=2)     # (bs, npairs, 2, nb_ft)
    rr = rr.reshape(-1, 2 * nb_ft)
    pred = pallas_resmlp(rr, resmlp_prep)                  # (bs*npairs, grid^2)
    pred = pred.reshape(bs, -1, grid_size, grid_size)
    out = jnp.zeros((bs, nb_var, nb_var, grid_size, grid_size), jnp.float32)
    out = out.at[:, r_idx, c_idx].set(pred)
    out = out.at[:, c_idx, r_idx].set(jnp.swapaxes(pred, 2, 3))
    return out


def get_batch_input(data, grid_size):
    # TODO(synk): get_batch_input() is not given in the reference source; stand-in
    # producing the expected (bs, nb_var, feature_size=2) float features.
    d = data.astype(jnp.float32)
    return jnp.stack([d / grid_size, (d != 0).astype(jnp.float32)], axis=-1)


def visual_net_forward(data, batch_idx, img_table, label_len, mnist_images,
                       prep, grid_size):
    # TODO(synk): hint selection is inherently host-side in the reference (Python
    # salted str-hash + torchvision dataset lookup); a single host readback of
    # sample 0 is kept, with a deterministic hash over an in-script image bank.
    sample = np.asarray(data[0])
    hints_idx, X = [], []
    for idx, c in enumerate(sample):
        c = int(c)
        if c != 0:
            img_idx = (c * 1315423911 + idx * 2654435761 + batch_idx * 97531) % int(label_len[c])
            X.append(mnist_images[int(img_table[c, img_idx])])
            hints_idx.append(idx)
    bs, nb_var = data.shape
    X = jnp.stack(X, axis=0)                               # (n_hints, 1, 28, 28)
    lenet_out = digit_conv_forward(X, prep["lenet"])       # (n_hints, 9)
    # Matches PyTorch: hints come from sample 0 and broadcast across the batch.
    hints_pba = jnp.zeros((bs, nb_var, grid_size), jnp.float32)
    hints_pba = hints_pba.at[:, jnp.asarray(hints_idx)].set(
        jnp.broadcast_to(lenet_out[None], (bs, len(hints_idx), grid_size)))
    nn_input = get_batch_input(data, grid_size)            # grounding == 0 path
    W = net_forward(nn_input, prep["resmlp"], grid_size)
    return W, hints_pba


# ---------------------------------------------------------------------------
# Deterministic parameter init (shapes from the PyTorch __init__)
# ---------------------------------------------------------------------------
def init_params(key, grid_size, hidden_size, nblocks):
    ks = jax.random.split(key, 8)

    def kaiming(k, shape, fan_in):
        bound = np.sqrt(6.0 / fan_in)  # kaiming_uniform, relu, fan_in
        return jax.random.uniform(k, shape, jnp.float32, -bound, bound)

    lenet = {
        "conv1_w": kaiming(ks[0], (20, 1, 5, 5), 25),
        "conv1_b": jnp.zeros((20,), jnp.float32),
        "conv2_w": kaiming(ks[1], (50, 20, 5, 5), 500),
        "conv2_b": jnp.zeros((50,), jnp.float32),
        "fc1_w": kaiming(ks[2], (500, 800), 800),
        "fc1_b": jnp.zeros((500,), jnp.float32),
        "fc2_w": kaiming(ks[3], (10, 500), 500),
        "fc2_b": jnp.zeros((10,), jnp.float32),
    }

    H = hidden_size
    in_size = 4                                   # 2 * embedding_dim * feature_size
    G2 = grid_size * grid_size
    eps = 1e-5
    # TODO(synk): BatchNorm1d implemented in eval mode (running_mean=0, running_var=1,
    # gamma=1, beta=0); training-mode batch statistics are not reproduced.
    bn_s = jnp.full((2 * nblocks + 1, H), 1.0 / np.sqrt(1.0 + eps), jnp.float32)
    bn_t = jnp.zeros((2 * nblocks + 1, H), jnp.float32)
    blk_keys = jax.random.split(ks[5], 2 * nblocks)
    w_blk = jnp.stack([kaiming(k, (H, H), H) for k in blk_keys])
    resmlp = {
        "w_in": kaiming(ks[4], (in_size, H), in_size),
        "b_in": jnp.zeros((1, H), jnp.float32),
        "bn_s": bn_s, "bn_t": bn_t,
        "w_blk": w_blk,
        "b_blk": jnp.zeros((2 * nblocks, H), jnp.float32),
        "w_out": kaiming(ks[6], (H, G2), H),
        "b_out": jnp.zeros((1, G2), jnp.float32),
    }
    return {"lenet": lenet, "resmlp": resmlp}


def prepare_params(params):
    """One-time conversion of PyTorch-layout params into lane-padded / block-diagonal
    bf16 matmul operands.  Hoisted out of the forward path (perf review item)."""
    lenet = params["lenet"]
    p = params["resmlp"]

    def pad_wb(w, b):
        K, N = w.shape
        Np = _round_up(N, 128)
        wp = jnp.pad(w, ((0, 0), (0, Np - N))).astype(jnp.bfloat16)
        bp = jnp.pad(b.reshape(1, N), ((0, 0), (0, Np - N))).astype(jnp.float32)
        return wp, bp, N

    def conv_mat(w):  # (O, C, kh, kw) -> (kh*kw*C, O), matching NHWC patch row order
        O = w.shape[0]
        return jnp.transpose(w, (2, 3, 1, 0)).reshape(-1, O)

    c1w, c1b, c1n = pad_wb(conv_mat(lenet["conv1_w"]), lenet["conv1_b"])
    c2w, c2b, c2n = pad_wb(conv_mat(lenet["conv2_w"]), lenet["conv2_b"])

    # fc1: PyTorch flatten is (C,H,W); our NHWC conv path flattens (H,W,C) -> permute rows once.
    C, Hh, Ww = 50, 4, 4
    perm = np.arange(C * Hh * Ww).reshape(C, Hh, Ww).transpose(1, 2, 0).reshape(-1)
    fc1_wT = lenet["fc1_w"].T[jnp.asarray(perm)]           # (800, 500), NHWC row order
    H1 = fc1_wT.shape[1]
    H1p = _round_up(H1, 128)
    fc1_wp = jnp.pad(fc1_wT, ((0, 0), (0, H1p - H1))).astype(jnp.bfloat16)
    fc1_bp = jnp.pad(lenet["fc1_b"].reshape(1, H1), ((0, 0), (0, H1p - H1)))
    fc2_wT = lenet["fc2_w"].T                              # (500, 10)
    N2 = fc2_wT.shape[1]
    N2p = _round_up(N2, 128)
    fc2_wp = jnp.pad(fc2_wT, ((0, H1p - H1), (0, N2p - N2))).astype(jnp.bfloat16)
    fc2_bp = jnp.pad(lenet["fc2_b"].reshape(1, N2), ((0, 0), (0, N2p - N2)))

    prep_lenet = {
        "conv1_w": c1w, "conv1_b": c1b, "conv1_n": c1n, "conv1_k": 5,
        "conv2_w": c2w, "conv2_b": c2b, "conv2_n": c2n, "conv2_k": 5,
        "fc1_w": fc1_wp, "fc1_b": fc1_bp,
        "fc2_w": fc2_wp, "fc2_b": fc2_bp, "fc2_n": N2,
    }

    # ResMLP: 4-sample lane-packed block-diagonal weights (bf16) + f32 BN/bias rows.
    K = p["w_in"].shape[0]                                 # 4
    G2 = p["w_out"].shape[1]                               # 81
    Kp = _round_up(K, 8)                                   # 8
    G2p = _round_up(G2, 128)                               # 128
    eye = jnp.eye(PACK, dtype=jnp.float32)
    w_in_bd = jnp.kron(eye, jnp.pad(p["w_in"], ((0, Kp - K), (0, 0)))).astype(jnp.bfloat16)
    b_in_bd = jnp.tile(p["b_in"], (1, PACK))
    bn_s_bd = jnp.tile(p["bn_s"], (1, PACK))
    bn_t_bd = jnp.tile(p["bn_t"], (1, PACK))
    w_blk_bd = jax.vmap(lambda w: jnp.kron(eye, w))(p["w_blk"]).astype(jnp.bfloat16)
    b_blk_bd = jnp.tile(p["b_blk"], (1, PACK))
    w_out_bd = jnp.kron(eye, jnp.pad(p["w_out"], ((0, 0), (0, G2p - G2)))).astype(jnp.bfloat16)
    b_out_bd = jnp.tile(jnp.pad(p["b_out"], ((0, 0), (0, G2p - G2))), (1, PACK))

    prep_resmlp = {
        "w_in_bd": w_in_bd, "b_in_bd": b_in_bd,
        "bn_s_bd": bn_s_bd, "bn_t_bd": bn_t_bd,
        "w_blk_bd": w_blk_bd, "b_blk_bd": b_blk_bd,
        "w_out_bd": w_out_bd, "b_out_bd": b_out_bd,
        "nblocks": p["w_blk"].shape[0] // 2, "g2": G2,
    }
    return {"lenet": prep_lenet, "resmlp": prep_resmlp}


# ---------------------------------------------------------------------------
if __name__ == "__main__":
    key = jax.random.PRNGKey(0)
    grid_size, hidden_size, nblocks = 9, 32, 2     # n_class must be 9 for the [:, :9] slice
    bs, nb_var = 2, grid_size * grid_size
    k1, k2, k3, k4 = jax.random.split(key, 4)

    params = init_params(k1, grid_size, hidden_size, nblocks)
    prep = prepare_params(params)                  # one-time weight prep, off the fwd path

    # Synthetic puzzle: mostly empty cells (0), some hints in 1..9.
    vals = jax.random.randint(k2, (bs, nb_var), 1, grid_size + 1)
    mask = jax.random.bernoulli(k3, 0.25, (bs, nb_var))
    data = jnp.where(mask, vals, 0).astype(jnp.int32)
    data = data.at[0, 0].set(5)                    # guarantee at least one hint in sample 0

    # Synthetic "MNIST" image bank + per-class lookup table.
    n_imgs, per_class = 64, 4
    mnist_images = jax.random.normal(k4, (n_imgs, 1, 28, 28), jnp.float32)
    img_table = (np.arange((grid_size + 1) * per_class)
                   .reshape(grid_size + 1, per_class) % n_imgs)
    label_len = np.full((grid_size + 1,), per_class, dtype=np.int64)

    W, hints_pba = visual_net_forward(data, 0, img_table, label_len,
                                      mnist_images, prep, grid_size)
    jax.block_until_ready((W, hints_pba))
    assert W.shape == (bs, nb_var, nb_var, grid_size, grid_size)
    assert hints_pba.shape == (bs, nb_var, grid_size)
    assert bool(jnp.all(jnp.isfinite(W))) and bool(jnp.all(jnp.isfinite(hints_pba)))
    print("KERNEL_OK")
</pallas_src>

<mosaic_0001>
module attributes {stable_mosaic.version = 11 : i64} {
  func.func @_linear_kernel(%arg0: i32, %arg1: memref<2048x25xbf16, #tpu.memory_space<vmem>>, %arg2: memref<25x128xbf16, #tpu.memory_space<vmem>>, %arg3: memref<1x128xf32, #tpu.memory_space<vmem>>, %arg4: memref<2048x128xf32, #tpu.memory_space<vmem>>) attributes {dimension_semantics = [#tpu.dimension_semantics<parallel>], iteration_bounds = array<i64: 6>, scalar_prefetch = 0 : i64, scratch_operands = 0 : i64, tpu.core_type = #tpu.core_type<tc>, window_params = [{transform_indices = @transform_0, window_bounds = array<i64: 2048, 25>}, {pipeline_mode = #tpu.pipeline_mode<synchronous>, transform_indices = @transform_1, window_bounds = array<i64: 25, 128>}, {pipeline_mode = #tpu.pipeline_mode<synchronous>, transform_indices = @transform_2, window_bounds = array<i64: 1, 128>}, {transform_indices = @transform_3, window_bounds = array<i64: 2048, 128>}]} {
    %c0 = arith.constant 0 : index
    %c0_0 = arith.constant 0 : index
    %0 = vector.load %arg1[%c0, %c0_0] : memref<2048x25xbf16, #tpu.memory_space<vmem>>, vector<2048x25xbf16>
    %c0_1 = arith.constant 0 : index
    %c0_2 = arith.constant 0 : index
    %1 = vector.load %arg2[%c0_1, %c0_2] : memref<25x128xbf16, #tpu.memory_space<vmem>>, vector<25x128xbf16>
    %cst = arith.constant dense<0.000000e+00> : vector<2048x128xf32>
    %2 = tpu.matmul %0, %1, %cst {dimension_numbers = #tpu.dot_dimension_numbers<[1], [0], [0], [1], [0, 0, 1, 1], [], []>} : vector<2048x25xbf16>, vector<25x128xbf16>, vector<2048x128xf32> -> vector<2048x128xf32>
    %c0_3 = arith.constant 0 : index
    %c0_4 = arith.constant 0 : index
    %3 = vector.load %arg3[%c0_3, %c0_4] : memref<1x128xf32, #tpu.memory_space<vmem>>, vector<1x128xf32>
    %4 = vector.broadcast %3 : vector<1x128xf32> to vector<2048x128xf32>
    %5 = arith.addf %2, %4 : vector<2048x128xf32>
    %cst_5 = arith.constant 0.000000e+00 : f32
    %6 = vector.broadcast %cst_5 : f32 to vector<2048x128xf32>
    %7 = arith.maximumf %5, %6 : vector<2048x128xf32>
    %c0_6 = arith.constant 0 : index
    %c0_7 = arith.constant 0 : index
    %8 = vector.load %arg4[%c0_6, %c0_7] : memref<2048x128xf32, #tpu.memory_space<vmem>>, vector<2048x128xf32>
    tpu.vector_store %arg4[%c0_6, %c0_7], %7 {strides = array<i32>} : memref<2048x128xf32, #tpu.memory_space<vmem>>, vector<2048x128xf32>,
    return
  }
  func.func @transform_0(%arg0: i32) -> (i32, i32) {
    %c0_i32 = arith.constant 0 : i32
    %c0_i32_0 = arith.constant 0 : i32
    return %arg0, %c0_i32 : i32, i32
  }
  func.func @transform_1(%arg0: i32) -> (i32, i32) {
    %c0_i32 = arith.constant 0 : i32
    %c0_i32_0 = arith.constant 0 : i32
    %c0_i32_1 = arith.constant 0 : i32
    return %c0_i32, %c0_i32_0 : i32, i32
  }
  func.func @transform_2(%arg0: i32) -> (i32, i32) {
    %c0_i32 = arith.constant 0 : i32
    %c0_i32_0 = arith.constant 0 : i32
    %c0_i32_1 = arith.constant 0 : i32
    return %c0_i32, %c0_i32_0 : i32, i32
  }
  func.func @transform_3(%arg0: i32) -> (i32, i32) {
    %c0_i32 = arith.constant 0 : i32
    %c0_i32_0 = arith.constant 0 : i32
    return %arg0, %c0_i32 : i32, i32
  }
}

</mosaic_0001>

<llo_original>
// kernel: tpu_custom_call.1
$region0: #{tpu_custom_call.1}
  #allocation0 [shape = 'u32[]', space=smem, size = 0x4, offset = 0x4, fixed_abs, tag = 'smem constant byte address 0x4 - core index']
  #allocation1 [shape = 'u32[144,128]{1,0:T(1,128)}', space=vmem, size = 0x12000, scoped, tag = 'internal scratch']
  %s0 = inlined_call_operand.vmem [shape: bf16[12288,25], index: 0, kind: input, shape index: {}]
  %s1 = inlined_call_operand.hbm [shape: bf16[25,128], index: 1, kind: input, shape index: {}]
  %s2 = inlined_call_operand.hbm [shape: f32[1,128], index: 2, kind: input, shape index: {}]
  %s3 = inlined_call_operand.hbm [shape: f32[12288,128], index: 3, kind: output, shape index: {}]
  %s4 = sld [smem:[#allocation0]]
  $region53: #{tpu_custom_call.1} parent=0
    _
  %s6 = ssub.s32 1, %s4
  %s7 = scalar_select 0, %s6, %s4
  $region1: #{tpu_custom_call.1} parent=0
    #allocation2 [shape = 'u8[8192]{0}', space=vmem, size = 0x2000, scoped, tag = 'input window, operand 1, single buffered']
    #allocation3 [shape = 's32[2]{0}', space=sflag, size = 0x8, scoped, tag = 'scoped memory for tpu_custom_call.1']
    #allocation4 [shape = 's32[2]{0}', space=sflag, size = 0x8, scoped, tag = 'scoped memory for tpu_custom_call.1']
    #allocation5 [shape = 'u8[512]{0}', space=vmem, size = 0x400, scoped, tag = 'input window, operand 2, single buffered']
    #allocation6 [shape = 's32[1]{0}', space=sflag, size = 0x4, scoped, tag = 'scoped memory for tpu_custom_call.1']
    #allocation7 [shape = 'u8[2097152]{0}', space=vmem, size = 0x200000, scoped, tag = 'output window, operand 0']
    %8 = vsyncpa [#allocation3], 0
    %9 = vsyncpa [#allocation6], 0
    %10 = vsyncpa [#allocation4], 0
    %s11 = scalar_lea.sflag [#allocation4], 1
    %12 = vsyncpa %s11, 0
    loop: start=0, step=1, limit=8
    $region2: #{tpu_custom_call.1} parent=1 // loop_pre_header
      _
    $region3: #{tpu_custom_call.1} parent=1 // loop_header
      %s14 = sphi 0, %s18
      %p15 = scmp.ge.s32.totalorder %s14, 8
      %s24 = sphi 0, %s26
      %s27 = sphi 0, %s24
      %s28 = sphi 0, %s27
      %s44 = sphi 0, %s28
      %s48 = sphi 0, %s48
      %s50 = sphi 0, %s48
      %s51 = sphi 0, %s50
      %s65 = sphi 0, %s51
      %s69 = sphi 0, %s69
      %s71 = sphi 0, %s69
      %s72 = sphi 0, %s71
      %s86 = sphi 0, %s72
      %s92 = sphi 0, %s94
      %s95 = sphi 0, %s92
      %s96 = sphi 0, %s95
      %s112 = sphi 0, %s96
    $region4: #{tpu_custom_call.1} parent=1 // loop_header_branch
      %17 = sbr.rel (%p15) target = $region8
    $region5: #{tpu_custom_call.1} parent=1 // loop_body
      %s19 = ssub.s32 %s14, 1
      %s20 = ssub.s32 %s14, 2
      %s21 = sadd.s32 %s14, 1
      %s22 = ssub.s32 %s14, %s21
      %p23 = scmp.eq.s32.totalorder %s22, 0
      %s25 = sadd.s32 %s24, 1
      %s26 = scalar_select %p23, %s24, %s25
      %p29 = pneg %p23
      %p30 = scmp.eq.s32.totalorder %s14, 5
      %p31 = por %p29, %p30
      %p32 = scmp.ne.s32.totalorder %s24, %s27
      %p33 = scmp.eq.s32.totalorder %s14, 0
      %p34 = por %p32, %p33
      %p35 = scmp.ne.s32.totalorder %s24, %s27
      %p36 = scmp.eq.s32.totalorder %s19, 5
      %p37 = por %p35, %p36
      %p38 = scmp.ne.s32.totalorder %s27, %s28
      %p39 = scmp.eq.s32.totalorder %s19, 0
      %p40 = por %p38, %p39
      %p41 = scmp.ne.s32.totalorder %s27, %s28
      %p42 = scmp.eq.s32.totalorder %s20, 5
      %p43 = por %p41, %p42
      %p45 = scmp.ne.s32.totalorder %s28, %s44
      %p46 = scmp.eq.s32.totalorder %s20, 0
      %p47 = por %p45, %p46
      %s49 = sadd.s32 %s48, 1
      %p52 = scmp.eq.s32.totalorder %s14, 5
      %p53 = scmp.ne.s32.totalorder %s48, %s50
      %p54 = scmp.eq.s32.totalorder %s14, 0
      %p55 = por %p53, %p54
      %p56 = scmp.ne.s32.totalorder %s48, %s50
      %p57 = scmp.eq.s32.totalorder %s19, 5
      %p58 = por %p56, %p57
      %p59 = scmp.ne.s32.totalorder %s50, %s51
      %p60 = scmp.eq.s32.totalorder %s19, 0
      %p61 = por %p59, %p60
      %p62 = scmp.ne.s32.totalorder %s50, %s51
      %p63 = scmp.eq.s32.totalorder %s20, 5
      %p64 = por %p62, %p63
      %p66 = scmp.ne.s32.totalorder %s51, %s65
      %p67 = scmp.eq.s32.totalorder %s20, 0
      %p68 = por %p66, %p67
      %s70 = sadd.s32 %s69, 1
      %p73 = scmp.eq.s32.totalorder %s14, 5
      %p74 = scmp.ne.s32.totalorder %s69, %s71
      %p75 = scmp.eq.s32.totalorder %s14, 0
      %p76 = por %p74, %p75
      %p77 = scmp.ne.s32.totalorder %s69, %s71
      %p78 = scmp.eq.s32.totalorder %s19, 5
      %p79 = por %p77, %p78
      %p80 = scmp.ne.s32.totalorder %s71, %s72
      %p81 = scmp.eq.s32.totalorder %s19, 0
      %p82 = por %p80, %p81
      %p83 = scmp.ne.s32.totalorder %s71, %s72
      %p84 = scmp.eq.s32.totalorder %s20, 5
      %p85 = por %p83, %p84
      %p87 = scmp.ne.s32.totalorder %s72, %s86
      %p88 = scmp.eq.s32.totalorder %s20, 0
      %p89 = por %p87, %p88
      %s90 = ssub.s32 %s14, %s21
      %p91 = scmp.eq.s32.totalorder %s90, 0
      %s93 = sadd.s32 %s92, 1
      %s94 = scalar_select %p91, %s92, %s93
      %p97 = pneg %p91
      %p98 = scmp.eq.s32.totalorder %s14, 5
      %p99 = por %p97, %p98
      %p100 = scmp.ne.s32.totalorder %s92, %s95
      %p101 = scmp.eq.s32.totalorder %s14, 0
      %p102 = por %p100, %p101
      %p103 = scmp.ne.s32.totalorder %s92, %s95
      %p104 = scmp.eq.s32.totalorder %s19, 5
      %p105 = por %p103, %p104
      %p106 = scmp.ne.s32.totalorder %s95, %s96
      %p107 = scmp.eq.s32.totalorder %s19, 0
      %p108 = por %p106, %p107
      %p109 = scmp.ne.s32.totalorder %s95, %s96
      %p110 = scmp.eq.s32.totalorder %s20, 5
      %p111 = por %p109, %p110
      %p113 = scmp.ne.s32.totalorder %s96, %s112
      %p114 = scmp.eq.s32.totalorder %s20, 0
      %p115 = por %p113, %p114
      %p116 = scmp.le.s32.totalorder 1, %s14
      %p117 = scmp.lt.s32.totalorder %s14, 7
      %p118 = pnand %p116, %p117
      %p119 = pneg %p118
      // Predicated region
      $region9: #{tpu_custom_call.1} parent=5 // pred_check
        _
      $region10: #{tpu_custom_call.1} parent=5 // pred_check_branch
        %121 = sbr.rel (%p118) target = $region12
      $region11: #{tpu_custom_call.1} parent=5 // pred_region
        %s122 = ssub.s32 %s14, 1
        // Predicated region
        $region13: #{tpu_custom_call.1} parent=11 // pred_check
          %p123 = pneg %p61
        $region14: #{tpu_custom_call.1} parent=11 // pred_check_branch
          %125 = sbr.rel (%p123) target = $region16
        $region15: #{tpu_custom_call.1} parent=11 // pred_region
          %s127 = ssub.s32 256, 256
          %128 = vsyncadd [#allocation3], %s127
          %s129 = sshll.u32 [#allocation2], 4
          %s130 = int_to_ptr.vmem [resolvable:$true] %s129
          %135 = dma.hbm_to_vmem [thread:$0]  %s1, 256, %s130, [#allocation3], 64, 64, 4
        $region16: #{tpu_custom_call.1} parent=11 // pred_fallthru
          _
        // Predicated region
        $region17: #{tpu_custom_call.1} parent=11 // pred_check
          %p136 = pneg %p82
        $region18: #{tpu_custom_call.1} parent=11 // pred_check_branch
          %138 = sbr.rel (%p136) target = $region20
        $region19: #{tpu_custom_call.1} parent=11 // pred_region
          %s140 = ssub.s32 16, 16
          %141 = vsyncadd [#allocation6], %s140
          %s143 = sshll.u32 [#allocation5], 4
          %s144 = int_to_ptr.vmem [resolvable:$true] %s143
          %146 = dma.hbm_to_vmem [thread:$0]  %s2, 16, %s144, [#allocation6]
        $region20: #{tpu_custom_call.1} parent=11 // pred_fallthru
          _
      $region12: #{tpu_custom_call.1} parent=5 // pred_fallthru
        _
      %p147 = scmp.lt.s32.totalorder %s14, 6
      // Predicated region
      $region21: #{tpu_custom_call.1} parent=5 // pred_check
        %p148 = pneg %p147
      $region22: #{tpu_custom_call.1} parent=5 // pred_check_branch
        %150 = sbr.rel (%p148) target = $region24
      $region23: #{tpu_custom_call.1} parent=5 // pred_region
        // Predicated region
        $region25: #{tpu_custom_call.1} parent=23 // pred_check
          %p151 = pneg %p34
        $region26: #{tpu_custom_call.1} parent=23 // pred_check_branch
          %153 = sbr.rel (%p151) target = $region28
        $region27: #{tpu_custom_call.1} parent=23 // pred_region
          %s154 = smul.u32 256, %s14
          %p155 = scmp.lt.s32.totalorder %s154, 1535
          %s156 = scalar_select %p155, %s154, 1535
          %s157 = smul.addr %s156, 4
          %s158 = scalar_lea.vmem %s0, %s157
          %s159 = smul.u32 256, %s14
        $region28: #{tpu_custom_call.1} parent=23 // pred_fallthru
          _
      $region24: #{tpu_custom_call.1} parent=5 // pred_fallthru
        _
      %p160 = scmp.le.s32.totalorder 1, %s14
      %p161 = scmp.lt.s32.totalorder %s14, 7
      %p162 = pnand %p160, %p161
      %p163 = pneg %p162
      // Predicated region
      $region29: #{tpu_custom_call.1} parent=5 // pred_check
        _
      $region30: #{tpu_custom_call.1} parent=5 // pred_check_branch
        %165 = sbr.rel (%p162) target = $region32
      $region31: #{tpu_custom_call.1} parent=5 // pred_region
        %s166 = ssub.s32 %s14, 1
        // Predicated region
        $region33: #{tpu_custom_call.1} parent=31 // pred_check
          %p167 = pneg %p61
        $region34: #{tpu_custom_call.1} parent=31 // pred_check_branch
          %169 = sbr.rel (%p167) target = $region36
        $region35: #{tpu_custom_call.1} parent=31 // pred_region
          %170 = dma.done [#allocation3], 256
        $region36: #{tpu_custom_call.1} parent=31 // pred_fallthru
          _
        // Predicated region
        $region37: #{tpu_custom_call.1} parent=31 // pred_check
          %p171 = pneg %p82
        $region38: #{tpu_custom_call.1} parent=31 // pred_check_branch
          %173 = sbr.rel (%p171) target = $region40
        $region39: #{tpu_custom_call.1} parent=31 // pred_region
          %174 = dma.done [#allocation6], 16
        $region40: #{tpu_custom_call.1} parent=31 // pred_fallthru
          _
        %s175 = smul.u32 256, %s19
        %p176 = scmp.lt.s32.totalorder %s175, 1535
        %s177 = scalar_select %p176, %s175, 1535
        %s178 = smul.addr %s177, 4
        %s179 = scalar_lea.vmem %s0, %s178
        %p180 = pneg %p40
        %p181 = pneg %p37
        %p182 = pneg %p61
        %p183 = pneg %p58
        %p184 = pneg %p82
        %p185 = pneg %p79
        %p186 = pneg %p108
        %p187 = pneg %p105
        %s188 = sand.u32 %s95, 1
        %s189 = scalar_lea.sflag [#allocation4], %s188
        %s190 = sand.u32 %s95, 1
        %s191 = smul.addr %s190, 2048
        %s192 = scalar_lea.vmem [#allocation7], %s191
        %s193 = smul.u32 256, %s19
        %p194 = scmp.lt.s32.totalorder %s193, 1535
        %s195 = scalar_select %p194, %s193, 1535
        %s196 = smul.addr %s195, 4
        %s197 = scalar_lea.vmem %s0, %s196
        %s198 = smul.u32 256, %s19
        %s199 = smul.u32 256, %s19
        %v201 = vld [vmem:[%s197] sm:$0xf]
        %v202 = vld [vmem:[%s197 + $0x4] sm:$0xf]
        %v203 = vld [vmem:[%s197 + $0x8] sm:$0xf]
        %v204 = vld [vmem:[%s197 + $0xc] sm:$0xf]
        %v205 = vld [vmem:[%s197 + $0x10] sm:$0xf]
        %v206 = vld [vmem:[%s197 + $0x14] sm:$0xf]
        %v207 = vld [vmem:[%s197 + $0x18] sm:$0xf]
        %v208 = vld [vmem:[%s197 + $0x1c] sm:$0xf]
        %v209 = vld [vmem:[%s197 + $0x20] sm:$0xf]
        %v210 = vld [vmem:[%s197 + $0x24] sm:$0xf]
        %v211 = vld [vmem:[%s197 + $0x28] sm:$0xf]
        %v212 = vld [vmem:[%s197 + $0x2c] sm:$0xf]
        %v213 = vld [vmem:[%s197 + $0x30] sm:$0xf]
        %v214 = vld [vmem:[%s197 + $0x34] sm:$0xf]
        %v215 = vld [vmem:[%s197 + $0x38] sm:$0xf]
        %v216 = vld [vmem:[%s197 + $0x3c] sm:$0xf]
        %v217 = vld [vmem:[%s197 + $0x40] sm:$0xf]
        %v218 = vld [vmem:[%s197 + $0x44] sm:$0xf]
        %v219 = vld [vmem:[%s197 + $0x48] sm:$0xf]
        %v220 = vld [vmem:[%s197 + $0x4c] sm:$0xf]
        %v221 = vld [vmem:[%s197 + $0x50] sm:$0xf]
        %v222 = vld [vmem:[%s197 + $0x54] sm:$0xf]
        %v223 = vld [vmem:[%s197 + $0x58] sm:$0xf]
        %v224 = vld [vmem:[%s197 + $0x5c] sm:$0xf]
        %v225 = vld [vmem:[%s197 + $0x60] sm:$0xf]
        %v226 = vld [vmem:[%s197 + $0x64] sm:$0xf]
        %v227 = vld [vmem:[%s197 + $0x68] sm:$0xf]
        %v228 = vld [vmem:[%s197 + $0x6c] sm:$0xf]
        %v229 = vld [vmem:[%s197 + $0x70] sm:$0xf]
        %v230 = vld [vmem:[%s197 + $0x74] sm:$0xf]
        %v231 = vld [vmem:[%s197 + $0x78] sm:$0xf]
        %v232 = vld [vmem:[%s197 + $0x7c] sm:$0xf]
        %v233 = vld [vmem:[%s197 + $0x80] sm:$0xf]
        %v234 = vld [vmem:[%s197 + $0x84] sm:$0xf]
        %v235 = vld [vmem:[%s197 + $0x88] sm:$0xf]
        %v236 = vld [vmem:[%s197 + $0x8c] sm:$0xf]
        %v237 = vld [vmem:[%s197 + $0x90] sm:$0xf]
        %v238 = vld [vmem:[%s197 + $0x94] sm:$0xf]
        %v239 = vld [vmem:[%s197 + $0x98] sm:$0xf]
        %v240 = vld [vmem:[%s197 + $0x9c] sm:$0xf]
        %v241 = vld [vmem:[%s197 + $0xa0] sm:$0xf]
        %v242 = vld [vmem:[%s197 + $0xa4] sm:$0xf]
        %v243 = vld [vmem:[%s197 + $0xa8] sm:$0xf]
        %v244 = vld [vmem:[%s197 + $0xac] sm:$0xf]
        %v245 = vld [vmem:[%s197 + $0xb0] sm:$0xf]
        %v246 = vld [vmem:[%s197 + $0xb4] sm:$0xf]
        %v247 = vld [vmem:[%s197 + $0xb8] sm:$0xf]
        %v248 = vld [vmem:[%s197 + $0xbc] sm:$0xf]
        %v249 = vld [vmem:[%s197 + $0xc0] sm:$0xf]
        %v250 = vld [vmem:[%s197 + $0xc4] sm:$0xf]
        %v251 = vld [vmem:[%s197 + $0xc8] sm:$0xf]
        %v252 = vld [vmem:[%s197 + $0xcc] sm:$0xf]
        %v253 = vld [vmem:[%s197 + $0xd0] sm:$0xf]
        %v254 = vld [vmem:[%s197 + $0xd4] sm:$0xf]
        %v255 = vld [vmem:[%s197 + $0xd8] sm:$0xf]
        %v256 = vld [vmem:[%s197 + $0xdc] sm:$0xf]
        %v257 = vld [vmem:[%s197 + $0xe0] sm:$0xf]
        %v258 = vld [vmem:[%s197 + $0xe4] sm:$0xf]
        %v259 = vld [vmem:[%s197 + $0xe8] sm:$0xf]
        %v260 = vld [vmem:[%s197 + $0xec] sm:$0xf]
        %v261 = vld [vmem:[%s197 + $0xf0] sm:$0xf]
        %v262 = vld [vmem:[%s197 + $0xf4] sm:$0xf]
        %v263 = vld [vmem:[%s197 + $0xf8] sm:$0xf]
        %v264 = vld [vmem:[%s197 + $0xfc] sm:$0xf]
        %v265 = vld [vmem:[%s197 + $0x100] sm:$0xf]
        %v266 = vld [vmem:[%s197 + $0x104] sm:$0xf]
        %v267 = vld [vmem:[%s197 + $0x108] sm:$0xf]
        %v268 = vld [vmem:[%s197 + $0x10c] sm:$0xf]
        %v269 = vld [vmem:[%s197 + $0x110] sm:$0xf]
        %v270 = vld [vmem:[%s197 + $0x114] sm:$0xf]
        %v271 = vld [vmem:[%s197 + $0x118] sm:$0xf]
        %v272 = vld [vmem:[%s197 + $0x11c] sm:$0xf]
        %v273 = vld [vmem:[%s197 + $0x120] sm:$0xf]
        %v274 = vld [vmem:[%s197 + $0x124] sm:$0xf]
        %v275 = vld [vmem:[%s197 + $0x128] sm:$0xf]
        %v276 = vld [vmem:[%s197 + $0x12c] sm:$0xf]
        %v277 = vld [vmem:[%s197 + $0x130] sm:$0xf]
        %v278 = vld [vmem:[%s197 + $0x134] sm:$0xf]
        %v279 = vld [vmem:[%s197 + $0x138] sm:$0xf]
        %v280 = vld [vmem:[%s197 + $0x13c] sm:$0xf]
        %v281 = vld [vmem:[%s197 + $0x140] sm:$0xf]
        %v282 = vld [vmem:[%s197 + $0x144] sm:$0xf]
        %v283 = vld [vmem:[%s197 + $0x148] sm:$0xf]
        %v284 = vld [vmem:[%s197 + $0x14c] sm:$0xf]
        %v285 = vld [vmem:[%s197 + $0x150] sm:$0xf]
        %v286 = vld [vmem:[%s197 + $0x154] sm:$0xf]
        %v287 = vld [vmem:[%s197 + $0x158] sm:$0xf]
        %v288 = vld [vmem:[%s197 + $0x15c] sm:$0xf]
        %v289 = vld [vmem:[%s197 + $0x160] sm:$0xf]
        %v290 = vld [vmem:[%s197 + $0x164] sm:$0xf]
        %v291 = vld [vmem:[%s197 + $0x168] sm:$0xf]
        %v292 = vld [vmem:[%s197 + $0x16c] sm:$0xf]
        %v293 = vld [vmem:[%s197 + $0x170] sm:$0xf]
        %v294 = vld [vmem:[%s197 + $0x174] sm:$0xf]
        %v295 = vld [vmem:[%s197 + $0x178] sm:$0xf]
        %v296 = vld [vmem:[%s197 + $0x17c] sm:$0xf]
        %v297 = vld [vmem:[%s197 + $0x180] sm:$0xf]
        %v298 = vld [vmem:[%s197 + $0x184] sm:$0xf]
        %v299 = vld [vmem:[%s197 + $0x188] sm:$0xf]
        %v300 = vld [vmem:[%s197 + $0x18c] sm:$0xf]
        %v301 = vld [vmem:[%s197 + $0x190] sm:$0xf]
        %v302 = vld [vmem:[%s197 + $0x194] sm:$0xf]
        %v303 = vld [vmem:[%s197 + $0x198] sm:$0xf]
        %v304 = vld [vmem:[%s197 + $0x19c] sm:$0xf]
        %v305 = vld [vmem:[%s197 + $0x1a0] sm:$0xf]
        %v306 = vld [vmem:[%s197 + $0x1a4] sm:$0xf]
        %v307 = vld [vmem:[%s197 + $0x1a8] sm:$0xf]
        %v308 = vld [vmem:[%s197 + $0x1ac] sm:$0xf]
        %v309 = vld [vmem:[%s197 + $0x1b0] sm:$0xf]
        %v310 = vld [vmem:[%s197 + $0x1b4] sm:$0xf]
        %v311 = vld [vmem:[%s197 + $0x1b8] sm:$0xf]
        %v312 = vld [vmem:[%s197 + $0x1bc] sm:$0xf]
        %v313 = vld [vmem:[%s197 + $0x1c0] sm:$0xf]
        %v314 = vld [vmem:[%s197 + $0x1c4] sm:$0xf]
        %v315 = vld [vmem:[%s197 + $0x1c8] sm:$0xf]
        %v316 = vld [vmem:[%s197 + $0x1cc] sm:$0xf]
        %v317 = vld [vmem:[%s197 + $0x1d0] sm:$0xf]
        %v318 = vld [vmem:[%s197 + $0x1d4] sm:$0xf]
        %v319 = vld [vmem:[%s197 + $0x1d8] sm:$0xf]
        %v320 = vld [vmem:[%s197 + $0x1dc] sm:$0xf]
        %v321 = vld [vmem:[%s197 + $0x1e0] sm:$0xf]
        %v322 = vld [vmem:[%s197 + $0x1e4] sm:$0xf]
        %v323 = vld [vmem:[%s197 + $0x1e8] sm:$0xf]
        %v324 = vld [vmem:[%s197 + $0x1ec] sm:$0xf]
        %v325 = vld [vmem:[%s197 + $0x1f0] sm:$0xf]
        %v326 = vld [vmem:[%s197 + $0x1f4] sm:$0xf]
        %v327 = vld [vmem:[%s197 + $0x1f8] sm:$0xf]
        %v328 = vld [vmem:[%s197 + $0x1fc] sm:$0xf]
        %v329 = vld [vmem:[%s197 + $0x200] sm:$0xf]
        %v330 = vld [vmem:[%s197 + $0x204] sm:$0xf]
        %v331 = vld [vmem:[%s197 + $0x208] sm:$0xf]
        %v332 = vld [vmem:[%s197 + $0x20c] sm:$0xf]
        %v333 = vld [vmem:[%s197 + $0x210] sm:$0xf]
        %v334 = vld [vmem:[%s197 + $0x214] sm:$0xf]
        %v335 = vld [vmem:[%s197 + $0x218] sm:$0xf]
        %v336 = vld [vmem:[%s197 + $0x21c] sm:$0xf]
        %v337 = vld [vmem:[%s197 + $0x220] sm:$0xf]
        %v338 = vld [vmem:[%s197 + $0x224] sm:$0xf]
        %v339 = vld [vmem:[%s197 + $0x228] sm:$0xf]
        %v340 = vld [vmem:[%s197 + $0x22c] sm:$0xf]
        %v341 = vld [vmem:[%s197 + $0x230] sm:$0xf]
        %v342 = vld [vmem:[%s197 + $0x234] sm:$0xf]
        %v343 = vld [vmem:[%s197 + $0x238] sm:$0xf]
        %v344 = vld [vmem:[%s197 + $0x23c] sm:$0xf]
        %v345 = vld [vmem:[%s197 + $0x240] sm:$0xf]
        %v346 = vld [vmem:[%s197 + $0x244] sm:$0xf]
        %v347 = vld [vmem:[%s197 + $0x248] sm:$0xf]
        %v348 = vld [vmem:[%s197 + $0x24c] sm:$0xf]
        %v349 = vld [vmem:[%s197 + $0x250] sm:$0xf]
        %v350 = vld [vmem:[%s197 + $0x254] sm:$0xf]
        %v351 = vld [vmem:[%s197 + $0x258] sm:$0xf]
        %v352 = vld [vmem:[%s197 + $0x25c] sm:$0xf]
        %v353 = vld [vmem:[%s197 + $0x260] sm:$0xf]
        %v354 = vld [vmem:[%s197 + $0x264] sm:$0xf]
        %v355 = vld [vmem:[%s197 + $0x268] sm:$0xf]
        %v356 = vld [vmem:[%s197 + $0x26c] sm:$0xf]
        %v357 = vld [vmem:[%s197 + $0x270] sm:$0xf]
        %v358 = vld [vmem:[%s197 + $0x274] sm:$0xf]
        %v359 = vld [vmem:[%s197 + $0x278] sm:$0xf]
        %v360 = vld [vmem:[%s197 + $0x27c] sm:$0xf]
        %v361 = vld [vmem:[%s197 + $0x280] sm:$0xf]
        %v362 = vld [vmem:[%s197 + $0x284] sm:$0xf]
        %v363 = vld [vmem:[%s197 + $0x288] sm:$0xf]
        %v364 = vld [vmem:[%s197 + $0x28c] sm:$0xf]
        %v365 = vld [vmem:[%s197 + $0x290] sm:$0xf]
        %v366 = vld [vmem:[%s197 + $0x294] sm:$0xf]
        %v367 = vld [vmem:[%s197 + $0x298] sm:$0xf]
        %v368 = vld [vmem:[%s197 + $0x29c] sm:$0xf]
        %v369 = vld [vmem:[%s197 + $0x2a0] sm:$0xf]
        %v370 = vld [vmem:[%s197 + $0x2a4] sm:$0xf]
        %v371 = vld [vmem:[%s197 + $0x2a8] sm:$0xf]
        %v372 = vld [vmem:[%s197 + $0x2ac] sm:$0xf]
        %v373 = vld [vmem:[%s197 + $0x2b0] sm:$0xf]
        %v374 = vld [vmem:[%s197 + $0x2b4] sm:$0xf]
        %v375 = vld [vmem:[%s197 + $0x2b8] sm:$0xf]
        %v376 = vld [vmem:[%s197 + $0x2bc] sm:$0xf]
        %v377 = vld [vmem:[%s197 + $0x2c0] sm:$0xf]
        %v378 = vld [vmem:[%s197 + $0x2c4] sm:$0xf]
        %v379 = vld [vmem:[%s197 + $0x2c8] sm:$0xf]
        %v380 = vld [vmem:[%s197 + $0x2cc] sm:$0xf]
        %v381 = vld [vmem:[%s197 + $0x2d0] sm:$0xf]
        %v382 = vld [vmem:[%s197 + $0x2d4] sm:$0xf]
        %v383 = vld [vmem:[%s197 + $0x2d8] sm:$0xf]
        %v384 = vld [vmem:[%s197 + $0x2dc] sm:$0xf]
        %v385 = vld [vmem:[%s197 + $0x2e0] sm:$0xf]
        %v386 = vld [vmem:[%s197 + $0x2e4] sm:$0xf]
        %v387 = vld [vmem:[%s197 + $0x2e8] sm:$0xf]
        %v388 = vld [vmem:[%s197 + $0x2ec] sm:$0xf]
        %v389 = vld [vmem:[%s197 + $0x2f0] sm:$0xf]
        %v390 = vld [vmem:[%s197 + $0x2f4] sm:$0xf]
        %v391 = vld [vmem:[%s197 + $0x2f8] sm:$0xf]
        %v392 = vld [vmem:[%s197 + $0x2fc] sm:$0xf]
        %v393 = vld [vmem:[%s197 + $0x300] sm:$0xf]
        %v394 = vld [vmem:[%s197 + $0x304] sm:$0xf]
        %v395 = vld [vmem:[%s197 + $0x308] sm:$0xf]
        %v396 = vld [vmem:[%s197 + $0x30c] sm:$0xf]
        %v397 = vld [vmem:[%s197 + $0x310] sm:$0xf]
        %v398 = vld [vmem:[%s197 + $0x314] sm:$0xf]
        %v399 = vld [vmem:[%s197 + $0x318] sm:$0xf]
        %v400 = vld [vmem:[%s197 + $0x31c] sm:$0xf]
        %v401 = vld [vmem:[%s197 + $0x320] sm:$0xf]
        %v402 = vld [vmem:[%s197 + $0x324] sm:$0xf]
        %v403 = vld [vmem:[%s197 + $0x328] sm:$0xf]
        %v404 = vld [vmem:[%s197 + $0x32c] sm:$0xf]
        %v405 = vld [vmem:[%s197 + $0x330] sm:$0xf]
        %v406 = vld [vmem:[%s197 + $0x334] sm:$0xf]
        %v407 = vld [vmem:[%s197 + $0x338] sm:$0xf]
        %v408 = vld [vmem:[%s197 + $0x33c] sm:$0xf]
        %v409 = vld [vmem:[%s197 + $0x340] sm:$0xf]
        %v410 = vld [vmem:[%s197 + $0x344] sm:$0xf]
        %v411 = vld [vmem:[%s197 + $0x348] sm:$0xf]
        %v412 = vld [vmem:[%s197 + $0x34c] sm:$0xf]
        %v413 = vld [vmem:[%s197 + $0x350] sm:$0xf]
        %v414 = vld [vmem:[%s197 + $0x354] sm:$0xf]
        %v415 = vld [vmem:[%s197 + $0x358] sm:$0xf]
        %v416 = vld [vmem:[%s197 + $0x35c] sm:$0xf]
        %v417 = vld [vmem:[%s197 + $0x360] sm:$0xf]
        %v418 = vld [vmem:[%s197 + $0x364] sm:$0xf]
        %v419 = vld [vmem:[%s197 + $0x368] sm:$0xf]
        %v420 = vld [vmem:[%s197 + $0x36c] sm:$0xf]
        %v421 = vld [vmem:[%s197 + $0x370] sm:$0xf]
        %v422 = vld [vmem:[%s197 + $0x374] sm:$0xf]
        %v423 = vld [vmem:[%s197 + $0x378] sm:$0xf]
        %v424 = vld [vmem:[%s197 + $0x37c] sm:$0xf]
        %v425 = vld [vmem:[%s197 + $0x380] sm:$0xf]
        %v426 = vld [vmem:[%s197 + $0x384] sm:$0xf]
        %v427 = vld [vmem:[%s197 + $0x388] sm:$0xf]
        %v428 = vld [vmem:[%s197 + $0x38c] sm:$0xf]
        %v429 = vld [vmem:[%s197 + $0x390] sm:$0xf]
        %v430 = vld [vmem:[%s197 + $0x394] sm:$0xf]
        %v431 = vld [vmem:[%s197 + $0x398] sm:$0xf]
        %v432 = vld [vmem:[%s197 + $0x39c] sm:$0xf]
        %v433 = vld [vmem:[%s197 + $0x3a0] sm:$0xf]
        %v434 = vld [vmem:[%s197 + $0x3a4] sm:$0xf]
        %v435 = vld [vmem:[%s197 + $0x3a8] sm:$0xf]
        %v436 = vld [vmem:[%s197 + $0x3ac] sm:$0xf]
        %v437 = vld [vmem:[%s197 + $0x3b0] sm:$0xf]
        %v438 = vld [vmem:[%s197 + $0x3b4] sm:$0xf]
        %v439 = vld [vmem:[%s197 + $0x3b8] sm:$0xf]
        %v440 = vld [vmem:[%s197 + $0x3bc] sm:$0xf]
        %v441 = vld [vmem:[%s197 + $0x3c0] sm:$0xf]
        %v442 = vld [vmem:[%s197 + $0x3c4] sm:$0xf]
        %v443 = vld [vmem:[%s197 + $0x3c8] sm:$0xf]
        %v444 = vld [vmem:[%s197 + $0x3cc] sm:$0xf]
        %v445 = vld [vmem:[%s197 + $0x3d0] sm:$0xf]
        %v446 = vld [vmem:[%s197 + $0x3d4] sm:$0xf]
        %v447 = vld [vmem:[%s197 + $0x3d8] sm:$0xf]
        %v448 = vld [vmem:[%s197 + $0x3dc] sm:$0xf]
        %v449 = vld [vmem:[%s197 + $0x3e0] sm:$0xf]
        %v450 = vld [vmem:[%s197 + $0x3e4] sm:$0xf]
        %v451 = vld [vmem:[%s197 + $0x3e8] sm:$0xf]
        %v452 = vld [vmem:[%s197 + $0x3ec] sm:$0xf]
        %v453 = vld [vmem:[%s197 + $0x3f0] sm:$0xf]
        %v454 = vld [vmem:[%s197 + $0x3f4] sm:$0xf]
        %v455 = vld [vmem:[%s197 + $0x3f8] sm:$0xf]
        %v456 = vld [vmem:[%s197 + $0x3fc] sm:$0xf]
        %v457 = vld [vmem:[#allocation2] sm:$0xf]
        %v458 = vld [vmem:[#allocation2 + $0x4] sm:$0xf]
        %v459 = vld [vmem:[#allocation2 + $0x8] sm:$0xf]
        %v460 = vld [vmem:[#allocation2 + $0xc] sm:$0x1]
        %v461 = vld [vmem:[#allocation5] sm:$0x1]
        %v463 = vlaneseq
        %v464 = vshrl.u32 %v463, 7
        %v465 = vsub.s32 0, %v464
        %v466 = vrot.slane %v461, %v465
        %v724 = vunpack.c.l.b16 %v201
        %v725 = vunpack.c.l.b16 %v202
        %v726 = vunpack.c.l.b16 %v203
        %v727 = vunpack.c.l.b16 %v204
        %v728 = vunpack.c.l.b16 %v205
        %v729 = vunpack.c.l.b16 %v206
        %v730 = vunpack.c.l.b16 %v207
        %v731 = vunpack.c.l.b16 %v208
        %v732 = vunpack.c.l.b16 %v209
        %v733 = vunpack.c.l.b16 %v210
        %v734 = vunpack.c.l.b16 %v211
        %v735 = vunpack.c.l.b16 %v212
        %v736 = vunpack.c.l.b16 %v213
        %v737 = vunpack.c.l.b16 %v214
        %v738 = vunpack.c.l.b16 %v215
        %v739 = vunpack.c.l.b16 %v216
        %v740 = vunpack.c.l.b16 %v217
        %v741 = vunpack.c.l.b16 %v218
        %v742 = vunpack.c.l.b16 %v219
        %v743 = vunpack.c.l.b16 %v220
        %v744 = vunpack.c.l.b16 %v221
        %v745 = vunpack.c.l.b16 %v222
        %v746 = vunpack.c.l.b16 %v223
        %v747 = vunpack.c.l.b16 %v224
        %v748 = vunpack.c.l.b16 %v225
        %v749 = vunpack.c.l.b16 %v226
        %v750 = vunpack.c.l.b16 %v227
        %v751 = vunpack.c.l.b16 %v228
        %v752 = vunpack.c.l.b16 %v229
        %v753 = vunpack.c.l.b16 %v230
        %v754 = vunpack.c.l.b16 %v231
        %v755 = vunpack.c.l.b16 %v232
        %v756 = vunpack.c.l.b16 %v233
        %v757 = vunpack.c.l.b16 %v234
        %v758 = vunpack.c.l.b16 %v235
        %v759 = vunpack.c.l.b16 %v236
        %v760 = vunpack.c.l.b16 %v237
        %v761 = vunpack.c.l.b16 %v238
        %v762 = vunpack.c.l.b16 %v239
        %v763 = vunpack.c.l.b16 %v240
        %v764 = vunpack.c.l.b16 %v241
        %v765 = vunpack.c.l.b16 %v242
        %v766 = vunpack.c.l.b16 %v243
        %v767 = vunpack.c.l.b16 %v244
        %v768 = vunpack.c.l.b16 %v245
        %v769 = vunpack.c.l.b16 %v246
        %v770 = vunpack.c.l.b16 %v247
        %v771 = vunpack.c.l.b16 %v248
        %v772 = vunpack.c.l.b16 %v249
        %v773 = vunpack.c.l.b16 %v250
        %v774 = vunpack.c.l.b16 %v251
        %v775 = vunpack.c.l.b16 %v252
        %v776 = vunpack.c.l.b16 %v253
        %v777 = vunpack.c.l.b16 %v254
        %v778 = vunpack.c.l.b16 %v255
        %v779 = vunpack.c.l.b16 %v256
        %v780 = vunpack.c.l.b16 %v257
        %v781 = vunpack.c.l.b16 %v258
        %v782 = vunpack.c.l.b16 %v259
        %v783 = vunpack.c.l.b16 %v260
        %v784 = vunpack.c.l.b16 %v261
        %v785 = vunpack.c.l.b16 %v262
        %v786 = vunpack.c.l.b16 %v263
        %v787 = vunpack.c.l.b16 %v264
        %v788 = vunpack.c.l.b16 %v265
        %v789 = vunpack.c.l.b16 %v266
        %v790 = vunpack.c.l.b16 %v267
        %v791 = vunpack.c.l.b16 %v268
        %v792 = vunpack.c.l.b16 %v269
        %v793 = vunpack.c.l.b16 %v270
        %v794 = vunpack.c.l.b16 %v271
        %v795 = vunpack.c.l.b16 %v272
        %v796 = vunpack.c.l.b16 %v273
        %v797 = vunpack.c.l.b16 %v274
        %v798 = vunpack.c.l.b16 %v275
        %v799 = vunpack.c.l.b16 %v276
        %v800 = vunpack.c.l.b16 %v277
        %v801 = vunpack.c.l.b16 %v278
        %v802 = vunpack.c.l.b16 %v279
        %v803 = vunpack.c.l.b16 %v280
        %v804 = vunpack.c.l.b16 %v281
        %v805 = vunpack.c.l.b16 %v282
        %v806 = vunpack.c.l.b16 %v283
        %v807 = vunpack.c.l.b16 %v284
        %v808 = vunpack.c.l.b16 %v285
        %v809 = vunpack.c.l.b16 %v286
        %v810 = vunpack.c.l.b16 %v287
        %v811 = vunpack.c.l.b16 %v288
        %v812 = vunpack.c.l.b16 %v289
        %v813 = vunpack.c.l.b16 %v290
        %v814 = vunpack.c.l.b16 %v291
        %v815 = vunpack.c.l.b16 %v292
        %v816 = vunpack.c.l.b16 %v293
        %v817 = vunpack.c.l.b16 %v294
        %v818 = vunpack.c.l.b16 %v295
        %v819 = vunpack.c.l.b16 %v296
        %v820 = vunpack.c.l.b16 %v297
        %v821 = vunpack.c.l.b16 %v298
        %v822 = vunpack.c.l.b16 %v299
        %v823 = vunpack.c.l.b16 %v300
        %v824 = vunpack.c.l.b16 %v301
        %v825 = vunpack.c.l.b16 %v302
        %v826 = vunpack.c.l.b16 %v303
        %v827 = vunpack.c.l.b16 %v304
        %v828 = vunpack.c.l.b16 %v305
        %v829 = vunpack.c.l.b16 %v306
        %v830 = vunpack.c.l.b16 %v307
        %v831 = vunpack.c.l.b16 %v308
        %v832 = vunpack.c.l.b16 %v309
        %v833 = vunpack.c.l.b16 %v310
        %v834 = vunpack.c.l.b16 %v311
        %v835 = vunpack.c.l.b16 %v312
        %v836 = vunpack.c.l.b16 %v313
        %v837 = vunpack.c.l.b16 %v314
        %v838 = vunpack.c.l.b16 %v315
        %v839 = vunpack.c.l.b16 %v316
        %v840 = vunpack.c.l.b16 %v317
        %v841 = vunpack.c.l.b16 %v318
        %v842 = vunpack.c.l.b16 %v319
        %v843 = vunpack.c.l.b16 %v320
        %v844 = vunpack.c.l.b16 %v321
        %v845 = vunpack.c.l.b16 %v322
        %v846 = vunpack.c.l.b16 %v323
        %v847 = vunpack.c.l.b16 %v324
        %v848 = vunpack.c.l.b16 %v325
        %v849 = vunpack.c.l.b16 %v326
        %v850 = vunpack.c.l.b16 %v327
        %v851 = vunpack.c.l.b16 %v328
        %v852 = vunpack.c.l.b16 %v329
        %v853 = vunpack.c.l.b16 %v330
        %v854 = vunpack.c.l.b16 %v331
        %v855 = vunpack.c.l.b16 %v332
        %v856 = vunpack.c.l.b16 %v333
        %v857 = vunpack.c.l.b16 %v334
        %v858 = vunpack.c.l.b16 %v335
        %v859 = vunpack.c.l.b16 %v336
        %v860 = vunpack.c.l.b16 %v337
        %v861 = vunpack.c.l.b16 %v338
        %v862 = vunpack.c.l.b16 %v339
        %v863 = vunpack.c.l.b16 %v340
        %v864 = vunpack.c.l.b16 %v341
        %v865 = vunpack.c.l.b16 %v342
        %v866 = vunpack.c.l.b16 %v343
        %v867 = vunpack.c.l.b16 %v344
        %v868 = vunpack.c.l.b16 %v345
        %v869 = vunpack.c.l.b16 %v346
        %v870 = vunpack.c.l.b16 %v347
        %v871 = vunpack.c.l.b16 %v348
        %v872 = vunpack.c.l.b16 %v349
        %v873 = vunpack.c.l.b16 %v350
        %v874 = vunpack.c.l.b16 %v351
        %v875 = vunpack.c.l.b16 %v352
        %v876 = vunpack.c.l.b16 %v353
        %v877 = vunpack.c.l.b16 %v354
        %v878 = vunpack.c.l.b16 %v355
        %v879 = vunpack.c.l.b16 %v356
        %v880 = vunpack.c.l.b16 %v357
        %v881 = vunpack.c.l.b16 %v358
        %v882 = vunpack.c.l.b16 %v359
        %v883 = vunpack.c.l.b16 %v360
        %v884 = vunpack.c.l.b16 %v361
        %v885 = vunpack.c.l.b16 %v362
        %v886 = vunpack.c.l.b16 %v363
        %v887 = vunpack.c.l.b16 %v364
        %v888 = vunpack.c.l.b16 %v365
        %v889 = vunpack.c.l.b16 %v366
        %v890 = vunpack.c.l.b16 %v367
        %v891 = vunpack.c.l.b16 %v368
        %v892 = vunpack.c.l.b16 %v369
        %v893 = vunpack.c.l.b16 %v370
        %v894 = vunpack.c.l.b16 %v371
        %v895 = vunpack.c.l.b16 %v372
        %v896 = vunpack.c.l.b16 %v373
        %v897 = vunpack.c.l.b16 %v374
        %v898 = vunpack.c.l.b16 %v375
        %v899 = vunpack.c.l.b16 %v376
        %v900 = vunpack.c.l.b16 %v377
        %v901 = vunpack.c.l.b16 %v378
        %v902 = vunpack.c.l.b16 %v379
        %v903 = vunpack.c.l.b16 %v380
        %v904 = vunpack.c.l.b16 %v381
        %v905 = vunpack.c.l.b16 %v382
        %v906 = vunpack.c.l.b16 %v383
        %v907 = vunpack.c.l.b16 %v384
        %v908 = vunpack.c.l.b16 %v385
        %v909 = vunpack.c.l.b16 %v386
        %v910 = vunpack.c.l.b16 %v387
        %v911 = vunpack.c.l.b16 %v388
        %v912 = vunpack.c.l.b16 %v389
        %v913 = vunpack.c.l.b16 %v390
        %v914 = vunpack.c.l.b16 %v391
        %v915 = vunpack.c.l.b16 %v392
        %v916 = vunpack.c.l.b16 %v393
        %v917 = vunpack.c.l.b16 %v394
        %v918 = vunpack.c.l.b16 %v395
        %v919 = vunpack.c.l.b16 %v396
        %v920 = vunpack.c.l.b16 %v397
        %v921 = vunpack.c.l.b16 %v398
        %v922 = vunpack.c.l.b16 %v399
        %v923 = vunpack.c.l.b16 %v400
        %v924 = vunpack.c.l.b16 %v401
        %v925 = vunpack.c.l.b16 %v402
        %v926 = vunpack.c.l.b16 %v403
        %v927 = vunpack.c.l.b16 %v404
        %v928 = vunpack.c.l.b16 %v405
        %v929 = vunpack.c.l.b16 %v406
        %v930 = vunpack.c.l.b16 %v407
        %v931 = vunpack.c.l.b16 %v408
        %v932 = vunpack.c.l.b16 %v409
        %v933 = vunpack.c.l.b16 %v410
        %v934 = vunpack.c.l.b16 %v411
        %v935 = vunpack.c.l.b16 %v412
        %v936 = vunpack.c.l.b16 %v413
        %v937 = vunpack.c.l.b16 %v414
        %v938 = vunpack.c.l.b16 %v415
        %v939 = vunpack.c.l.b16 %v416
        %v940 = vunpack.c.l.b16 %v417
        %v941 = vunpack.c.l.b16 %v418
        %v942 = vunpack.c.l.b16 %v419
        %v943 = vunpack.c.l.b16 %v420
        %v944 = vunpack.c.l.b16 %v421
        %v945 = vunpack.c.l.b16 %v422
        %v946 = vunpack.c.l.b16 %v423
        %v947 = vunpack.c.l.b16 %v424
        %v948 = vunpack.c.l.b16 %v425
        %v949 = vunpack.c.l.b16 %v426
        %v950 = vunpack.c.l.b16 %v427
        %v951 = vunpack.c.l.b16 %v428
        %v952 = vunpack.c.l.b16 %v429
        %v953 = vunpack.c.l.b16 %v430
        %v954 = vunpack.c.l.b16 %v431
        %v955 = vunpack.c.l.b16 %v432
        %v956 = vunpack.c.l.b16 %v433
        %v957 = vunpack.c.l.b16 %v434
        %v958 = vunpack.c.l.b16 %v435
        %v959 = vunpack.c.l.b16 %v436
        %v960 = vunpack.c.l.b16 %v437
        %v961 = vunpack.c.l.b16 %v438
        %v962 = vunpack.c.l.b16 %v439
        %v963 = vunpack.c.l.b16 %v440
        %v964 = vunpack.c.l.b16 %v441
        %v965 = vunpack.c.l.b16 %v442
        %v966 = vunpack.c.l.b16 %v443
        %v967 = vunpack.c.l.b16 %v444
        %v968 = vunpack.c.l.b16 %v445
        %v969 = vunpack.c.l.b16 %v446
        %v970 = vunpack.c.l.b16 %v447
        %v971 = vunpack.c.l.b16 %v448
        %v972 = vunpack.c.l.b16 %v449
        %v973 = vunpack.c.l.b16 %v450
        %v974 = vunpack.c.l.b16 %v451
        %v975 = vunpack.c.l.b16 %v452
        %v976 = vunpack.c.l.b16 %v453
        %v977 = vunpack.c.l.b16 %v454
        %v978 = vunpack.c.l.b16 %v455
        %v979 = vunpack.c.l.b16 %v456
        %v980 = vpack.c.b16 %v725, %v724
        %v981 = vpack.c.b16 %v727, %v726
        %v982 = vpack.c.b16 %v729, %v728
        %v983 = vpack.c.b16 %v731, %v730
        %v984 = vpack.c.b16 %v733, %v732
        %v985 = vpack.c.b16 %v735, %v734
        %v986 = vpack.c.b16 %v737, %v736
        %v987 = vpack.c.b16 %v739, %v738
        %v988 = vpack.c.b16 %v741, %v740
        %v989 = vpack.c.b16 %v743, %v742
        %v990 = vpack.c.b16 %v745, %v744
        %v991 = vpack.c.b16 %v747, %v746
        %v992 = vpack.c.b16 %v749, %v748
        %v993 = vpack.c.b16 %v751, %v750
        %v994 = vpack.c.b16 %v753, %v752
        %v995 = vpack.c.b16 %v755, %v754
        %v996 = vpack.c.b16 %v757, %v756
        %v997 = vpack.c.b16 %v759, %v758
        %v998 = vpack.c.b16 %v761, %v760
        %v999 = vpack.c.b16 %v763, %v762
        %v1000 = vpack.c.b16 %v765, %v764
        %v1001 = vpack.c.b16 %v767, %v766
        %v1002 = vpack.c.b16 %v769, %v768
        %v1003 = vpack.c.b16 %v771, %v770
        %v1004 = vpack.c.b16 %v773, %v772
        %v1005 = vpack.c.b16 %v775, %v774
        %v1006 = vpack.c.b16 %v777, %v776
        %v1007 = vpack.c.b16 %v779, %v778
        %v1008 = vpack.c.b16 %v781, %v780
        %v1009 = vpack.c.b16 %v783, %v782
        %v1010 = vpack.c.b16 %v785, %v784
        %v1011 = vpack.c.b16 %v787, %v786
        %v1012 = vpack.c.b16 %v789, %v788
        %v1013 = vpack.c.b16 %v791, %v790
        %v1014 = vpack.c.b16 %v793, %v792
        %v1015 = vpack.c.b16 %v795, %v794
        %v1016 = vpack.c.b16 %v797, %v796
        %v1017 = vpack.c.b16 %v799, %v798
        %v1018 = vpack.c.b16 %v801, %v800
        %v1019 = vpack.c.b16 %v803, %v802
        %v1020 = vpack.c.b16 %v805, %v804
        %v1021 = vpack.c.b16 %v807, %v806
        %v1022 = vpack.c.b16 %v809, %v808
        %v1023 = vpack.c.b16 %v811, %v810
        %v1024 = vpack.c.b16 %v813, %v812
        %v1025 = vpack.c.b16 %v815, %v814
        %v1026 = vpack.c.b16 %v817, %v816
        %v1027 = vpack.c.b16 %v819, %v818
        %v1028 = vpack.c.b16 %v821, %v820
        %v1029 = vpack.c.b16 %v823, %v822
        %v1030 = vpack.c.b16 %v825, %v824
        %v1031 = vpack.c.b16 %v827, %v826
        %v1032 = vpack.c.b16 %v829, %v828
        %v1033 = vpack.c.b16 %v831, %v830
        %v1034 = vpack.c.b16 %v833, %v832
        %v1035 = vpack.c.b16 %v835, %v834
        %v1036 = vpack.c.b16 %v837, %v836
        %v1037 = vpack.c.b16 %v839, %v838
        %v1038 = vpack.c.b16 %v841, %v840
        %v1039 = vpack.c.b16 %v843, %v842
        %v1040 = vpack.c.b16 %v845, %v844
        %v1041 = vpack.c.b16 %v847, %v846
        %v1042 = vpack.c.b16 %v849, %v848
        %v1043 = vpack.c.b16 %v851, %v850
        %v1044 = vpack.c.b16 %v853, %v852
        %v1045 = vpack.c.b16 %v855, %v854
        %v1046 = vpack.c.b16 %v857, %v856
        %v1047 = vpack.c.b16 %v859, %v858
        %v1048 = vpack.c.b16 %v861, %v860
        %v1049 = vpack.c.b16 %v863, %v862
        %v1050 = vpack.c.b16 %v865, %v864
        %v1051 = vpack.c.b16 %v867, %v866
        %v1052 = vpack.c.b16 %v869, %v868
        %v1053 = vpack.c.b16 %v871, %v870
        %v1054 = vpack.c.b16 %v873, %v872
        %v1055 = vpack.c.b16 %v875, %v874
        %v1056 = vpack.c.b16 %v877, %v876
        %v1057 = vpack.c.b16 %v879, %v878
        %v1058 = vpack.c.b16 %v881, %v880
        %v1059 = vpack.c.b16 %v883, %v882
        %v1060 = vpack.c.b16 %v885, %v884
        %v1061 = vpack.c.b16 %v887, %v886
        %v1062 = vpack.c.b16 %v889, %v888
        %v1063 = vpack.c.b16 %v891, %v890
        %v1064 = vpack.c.b16 %v893, %v892
        %v1065 = vpack.c.b16 %v895, %v894
        %v1066 = vpack.c.b16 %v897, %v896
        %v1067 = vpack.c.b16 %v899, %v898
        %v1068 = vpack.c.b16 %v901, %v900
        %v1069 = vpack.c.b16 %v903, %v902
        %v1070 = vpack.c.b16 %v905, %v904
        %v1071 = vpack.c.b16 %v907, %v906
        %v1072 = vpack.c.b16 %v909, %v908
        %v1073 = vpack.c.b16 %v911, %v910
        %v1074 = vpack.c.b16 %v913, %v912
        %v1075 = vpack.c.b16 %v915, %v914
        %v1076 = vpack.c.b16 %v917, %v916
        %v1077 = vpack.c.b16 %v919, %v918
        %v1078 = vpack.c.b16 %v921, %v920
        %v1079 = vpack.c.b16 %v923, %v922
        %v1080 = vpack.c.b16 %v925, %v924
        %v1081 = vpack.c.b16 %v927, %v926
        %v1082 = vpack.c.b16 %v929, %v928
        %v1083 = vpack.c.b16 %v931, %v930
        %v1084 = vpack.c.b16 %v933, %v932
        %v1085 = vpack.c.b16 %v935, %v934
        %v1086 = vpack.c.b16 %v937, %v936
        %v1087 = vpack.c.b16 %v939, %v938
        %v1088 = vpack.c.b16 %v941, %v940
        %v1089 = vpack.c.b16 %v943, %v942
        %v1090 = vpack.c.b16 %v945, %v944
        %v1091 = vpack.c.b16 %v947, %v946
        %v1092 = vpack.c.b16 %v949, %v948
        %v1093 = vpack.c.b16 %v951, %v950
        %v1094 = vpack.c.b16 %v953, %v952
        %v1095 = vpack.c.b16 %v955, %v954
        %v1096 = vpack.c.b16 %v957, %v956
        %v1097 = vpack.c.b16 %v959, %v958
        %v1098 = vpack.c.b16 %v961, %v960
        %v1099 = vpack.c.b16 %v963, %v962
        %v1100 = vpack.c.b16 %v965, %v964
        %v1101 = vpack.c.b16 %v967, %v966
        %v1102 = vpack.c.b16 %v969, %v968
        %v1103 = vpack.c.b16 %v971, %v970
        %v1104 = vpack.c.b16 %v973, %v972
        %v1105 = vpack.c.b16 %v975, %v974
        %v1106 = vpack.c.b16 %v977, %v976
        %v1107 = vpack.c.b16 %v979, %v978
        %v1112 = vunpack.c.l.b16 %v457
        %v1113 = vunpack.c.l.b16 %v458
        %v1114 = vunpack.c.l.b16 %v459
        %v1115 = vunpack.c.l.b16 %v460
        %v1116 = vpack.c.b16 %v1113, %v1112
        %v1117 = vpack.c.b16 %v1115, %v1114
        %vm1119 = vcmask 203776
        %v1121 = vsel %vm1119, %v980, 0
        %v1124 = vsel %vm1119, %v981, 0
        %v1127 = vsel %vm1119, %v982, 0
        %v1130 = vsel %vm1119, %v983, 0
        %v1133 = vsel %vm1119, %v984, 0
        %v1136 = vsel %vm1119, %v985, 0
        %v1139 = vsel %vm1119, %v986, 0
        %v1142 = vsel %vm1119, %v987, 0
        %v1145 = vsel %vm1119, %v988, 0
        %v1148 = vsel %vm1119, %v989, 0
        %v1151 = vsel %vm1119, %v990, 0
        %v1154 = vsel %vm1119, %v991, 0
        %v1157 = vsel %vm1119, %v992, 0
        %v1160 = vsel %vm1119, %v993, 0
        %v1163 = vsel %vm1119, %v994, 0
        %v1166 = vsel %vm1119, %v995, 0
        %v1169 = vsel %vm1119, %v996, 0
        %v1172 = vsel %vm1119, %v997, 0
        %v1175 = vsel %vm1119, %v998, 0
        %v1178 = vsel %vm1119, %v999, 0
        %v1181 = vsel %vm1119, %v1000, 0
        %v1184 = vsel %vm1119, %v1001, 0
        %v1187 = vsel %vm1119, %v1002, 0
        %v1190 = vsel %vm1119, %v1003, 0
        %v1193 = vsel %vm1119, %v1004, 0
        %v1196 = vsel %vm1119, %v1005, 0
        %v1199 = vsel %vm1119, %v1006, 0
        %v1202 = vsel %vm1119, %v1007, 0
        %v1205 = vsel %vm1119, %v1008, 0
        %v1208 = vsel %vm1119, %v1009, 0
        %v1211 = vsel %vm1119, %v1010, 0
        %v1214 = vsel %vm1119, %v1011, 0
        %v1217 = vsel %vm1119, %v1012, 0
        %v1220 = vsel %vm1119, %v1013, 0
        %v1223 = vsel %vm1119, %v1014, 0
        %v1226 = vsel %vm1119, %v1015, 0
        %v1229 = vsel %vm1119, %v1016, 0
        %v1232 = vsel %vm1119, %v1017, 0
        %v1235 = vsel %vm1119, %v1018, 0
        %v1238 = vsel %vm1119, %v1019, 0
        %v1241 = vsel %vm1119, %v1020, 0
        %v1244 = vsel %vm1119, %v1021, 0
        %v1247 = vsel %vm1119, %v1022, 0
        %v1250 = vsel %vm1119, %v1023, 0
        %v1253 = vsel %vm1119, %v1024, 0
        %v1256 = vsel %vm1119, %v1025, 0
        %v1259 = vsel %vm1119, %v1026, 0
        %v1262 = vsel %vm1119, %v1027, 0
        %v1265 = vsel %vm1119, %v1028, 0
        %v1268 = vsel %vm1119, %v1029, 0
        %v1271 = vsel %vm1119, %v1030, 0
        %v1274 = vsel %vm1119, %v1031, 0
        %v1277 = vsel %vm1119, %v1032, 0
        %v1280 = vsel %vm1119, %v1033, 0
        %v1283 = vsel %vm1119, %v1034, 0
        %v1286 = vsel %vm1119, %v1035, 0
        %v1289 = vsel %vm1119, %v1036, 0
        %v1292 = vsel %vm1119, %v1037, 0
        %v1295 = vsel %vm1119, %v1038, 0
        %v1298 = vsel %vm1119, %v1039, 0
        %v1301 = vsel %vm1119, %v1040, 0
        %v1304 = vsel %vm1119, %v1041, 0
        %v1307 = vsel %vm1119, %v1042, 0
        %v1310 = vsel %vm1119, %v1043, 0
        %v1313 = vsel %vm1119, %v1044, 0
        %v1316 = vsel %vm1119, %v1045, 0
        %v1319 = vsel %vm1119, %v1046, 0
        %v1322 = vsel %vm1119, %v1047, 0
        %v1325 = vsel %vm1119, %v1048, 0
        %v1328 = vsel %vm1119, %v1049, 0
        %v1331 = vsel %vm1119, %v1050, 0
        %v1334 = vsel %vm1119, %v1051, 0
        %v1337 = vsel %vm1119, %v1052, 0
        %v1340 = vsel %vm1119, %v1053, 0
        %v1343 = vsel %vm1119, %v1054, 0
        %v1346 = vsel %vm1119, %v1055, 0
        %v1349 = vsel %vm1119, %v1056, 0
        %v1352 = vsel %vm1119, %v1057, 0
        %v1355 = vsel %vm1119, %v1058, 0
        %v1358 = vsel %vm1119, %v1059, 0
        %v1361 = vsel %vm1119, %v1060, 0
        %v1364 = vsel %vm1119, %v1061, 0
        %v1367 = vsel %vm1119, %v1062, 0
        %v1370 = vsel %vm1119, %v1063, 0
        %v1373 = vsel %vm1119, %v1064, 0
        %v1376 = vsel %vm1119, %v1065, 0
        %v1379 = vsel %vm1119, %v1066, 0
        %v1382 = vsel %vm1119, %v1067, 0
        %v1385 = vsel %vm1119, %v1068, 0
        %v1388 = vsel %vm1119, %v1069, 0
        %v1391 = vsel %vm1119, %v1070, 0
        %v1394 = vsel %vm1119, %v1071, 0
        %v1397 = vsel %vm1119, %v1072, 0
        %v1400 = vsel %vm1119, %v1073, 0
        %v1403 = vsel %vm1119, %v1074, 0
        %v1406 = vsel %vm1119, %v1075, 0
        %v1409 = vsel %vm1119, %v1076, 0
        %v1412 = vsel %vm1119, %v1077, 0
        %v1415 = vsel %vm1119, %v1078, 0
        %v1418 = vsel %vm1119, %v1079, 0
        %v1421 = vsel %vm1119, %v1080, 0
        %v1424 = vsel %vm1119, %v1081, 0
        %v1427 = vsel %vm1119, %v1082, 0
        %v1430 = vsel %vm1119, %v1083, 0
        %v1433 = vsel %vm1119, %v1084, 0
        %v1436 = vsel %vm1119, %v1085, 0
        %v1439 = vsel %vm1119, %v1086, 0
        %v1442 = vsel %vm1119, %v1087, 0
        %v1445 = vsel %vm1119, %v1088, 0
        %v1448 = vsel %vm1119, %v1089, 0
        %v1451 = vsel %vm1119, %v1090, 0
        %v1454 = vsel %vm1119, %v1091, 0
        %v1457 = vsel %vm1119, %v1092, 0
        %v1460 = vsel %vm1119, %v1093, 0
        %v1463 = vsel %vm1119, %v1094, 0
        %v1466 = vsel %vm1119, %v1095, 0
        %v1469 = vsel %vm1119, %v1096, 0
        %v1472 = vsel %vm1119, %v1097, 0
        %v1475 = vsel %vm1119, %v1098, 0
        %v1478 = vsel %vm1119, %v1099, 0
        %v1481 = vsel %vm1119, %v1100, 0
        %v1484 = vsel %vm1119, %v1101, 0
        %v1487 = vsel %vm1119, %v1102, 0
        %v1490 = vsel %vm1119, %v1103, 0
        %v1493 = vsel %vm1119, %v1104, 0
        %v1496 = vsel %vm1119, %v1105, 0
        %v1499 = vsel %vm1119, %v1106, 0
        %v1502 = vsel %vm1119, %v1107, 0
        %vm1504 = vcmask 1043456
        %vm1505 = vcmask 1044480
        %v1506 = vsel %vm1504, 4294967295, 65535
        %v1507 = vsel %vm1505, %v1506, 0
        %v1509 = vand.u32 %v1117, %v1507
        %1511 = vmatprep.subr.bf16.mxu0 0
        %1512 = vmatpush1.bf16.msra.mxu0 %v1116
        %1513 = vmatprep.subr.bf16.mxu0 0
        %1514 = vmatpush1.bf16.msra.mxu0 %v1509
        %1515 = vmatprep.subr.bf16.mxu0 0
        %1516 = vmatpush1.bf16.msra.mxu0 0
        %1517 = vmatprep.subr.bf16.mxu0 0
        %1518 = vmatpush1.bf16.msra.mxu0 0
        %1519 = vmatprep.subr.bf16.mxu0 0
        %1520 = vmatpush1.bf16.msra.mxu0 0
        %1521 = vmatprep.subr.bf16.mxu0 0
        %1522 = vmatpush1.bf16.msra.mxu0 0
        %1523 = vmatprep.subr.bf16.mxu0 0
        %1524 = vmatpush1.bf16.msra.mxu0 0
        %1525 = vmatprep.subr.bf16.mxu0 0
        %1526 = vmatpush1.bf16.msra.mxu0 0
        %1527 = vmatprep.subr.bf16.mxu0 0
        %1528 = vmatpush1.bf16.msra.mxu0 0
        %1529 = vmatprep.subr.bf16.mxu0 0
        %1530 = vmatpush1.bf16.msra.mxu0 0
        %1531 = vmatprep.subr.bf16.mxu0 0
        %1532 = vmatpush1.bf16.msra.mxu0 0
        %1533 = vmatprep.subr.bf16.mxu0 0
        %1534 = vmatpush1.bf16.msra.mxu0 0
        %1535 = vmatprep.subr.bf16.mxu0 0
        %1536 = vmatpush1.bf16.msra.mxu0 0
        %1537 = vmatprep.subr.bf16.mxu0 0
        %1538 = vmatpush1.bf16.msra.mxu0 0
        %1539 = vmatprep.subr.bf16.mxu0 0
        %1540 = vmatpush1.bf16.msra.mxu0 0
        %1541 = vmatprep.subr.bf16.mxu0 0
        %1542 = vmatpush1.bf16.msra.mxu0 0
        %1543 = vmatprep.mubr.bf16.mxu0 0
        %1544 = vmatmul.mubr.bf16.gmra.mrb[0].mxu0 %v1121
        %v1545 = vpop.f32.mrb[0].mxu0
        %v1546 = vadd.f32 %v466, %v1545
        %v1547 = vpop.f32.mrb[0].mxu0
        %v1548 = vpop.f32.mrb[0].mxu0
        %v1549 = vadd.f32 %v466, %v1548
        %v1550 = vpop.f32.mrb[0].mxu0
        %1551 = vmatprep.mubr.bf16.mxu0 0
        %1552 = vmatmul.mubr.bf16.gmra.mrb[0].mxu0 %v1124
        %v1553 = vpop.f32.mrb[0].mxu0
        %v1554 = vadd.f32 %v466, %v1553
        %v1555 = vpop.f32.mrb[0].mxu0
        %v1556 = vpop.f32.mrb[0].mxu0
        %v1557 = vadd.f32 %v466, %v1556
        %v1558 = vpop.f32.mrb[0].mxu0
        %1559 = vmatprep.mubr.bf16.mxu0 0
        %1560 = vmatmul.mubr.bf16.gmra.mrb[0].mxu0 %v1127
        %v1561 = vpop.f32.mrb[0].mxu0
        %v1562 = vadd.f32 %v466, %v1561
        %v1563 = vpop.f32.mrb[0].mxu0
        %v1564 = vpop.f32.mrb[0].mxu0
        %v1565 = vadd.f32 %v466, %v1564
        %v1566 = vpop.f32.mrb[0].mxu0
        %1567 = vmatprep.mubr.bf16.mxu0 0
        %1568 = vmatmul.mubr.bf16.gmra.mrb[0].mxu0 %v1130
        %v1569 = vpop.f32.mrb[0].mxu0
        %v1570 = vadd.f32 %v466, %v1569
        %v1571 = vpop.f32.mrb[0].mxu0
        %v1572 = vpop.f32.mrb[0].mxu0
        %v1573 = vadd.f32 %v466, %v1572
        %v1574 = vpop.f32.mrb[0].mxu0
        %1575 = vmatprep.mubr.bf16.mxu0 0
        %1576 = vmatmul.mubr.bf16.gmra.mrb[0].mxu0 %v1133
        %v1577 = vpop.f32.mrb[0].mxu0
        %v1578 = vadd.f32 %v466, %v1577
        %v1579 = vpop.f32.mrb[0].mxu0
        %v1580 = vpop.f32.mrb[0].mxu0
        %v1581 = vadd.f32 %v466, %v1580
        %v1582 = vpop.f32.mrb[0].mxu0
        %1583 = vmatprep.mubr.bf16.mxu0 0
        %1584 = vmatmul.mubr.bf16.gmra.mrb[0].mxu0 %v1136
        %v1585 = vpop.f32.mrb[0].mxu0
        %v1586 = vadd.f32 %v466, %v1585
        %v1587 = vpop.f32.mrb[0].mxu0
        %v1588 = vpop.f32.mrb[0].mxu0
        %v1589 = vadd.f32 %v466, %v1588
        %v1590 = vpop.f32.mrb[0].mxu0
        %1591 = vmatprep.mubr.bf16.mxu0 0
        %1592 = vmatmul.mubr.bf16.gmra.mrb[0].mxu0 %v1139
        %v1593 = vpop.f32.mrb[0].mxu0
        %v1594 = vadd.f32 %v466, %v1593
        %v1595 = vpop.f32.mrb[0].mxu0
        %v1596 = vpop.f32.mrb[0].mxu0
        %v1597 = vadd.f32 %v466, %v1596
        %v1598 = vpop.f32.mrb[0].mxu0
        %1599 = vmatprep.mubr.bf16.mxu0 0
        %1600 = vmatmul.mubr.bf16.gmra.mrb[0].mxu0 %v1142
        %v1601 = vpop.f32.mrb[0].mxu0
        %v1602 = vadd.f32 %v466, %v1601
        %v1603 = vpop.f32.mrb[0].mxu0
        %v1604 = vpop.f32.mrb[0].mxu0
        %v1605 = vadd.f32 %v466, %v1604
        %v1606 = vpop.f32.mrb[0].mxu0
        %1607 = vmatprep.mubr.bf16.mxu0 0
        %1608 = vmatmul.mubr.bf16.gmra.mrb[0].mxu0 %v1145
        %v1609 = vpop.f32.mrb[0].mxu0
        %v1610 = vadd.f32 %v466, %v1609
        %v1611 = vpop.f32.mrb[0].mxu0
        %v1612 = vpop.f32.mrb[0].mxu0
        %v1613 = vadd.f32 %v466, %v1612
        %v1614 = vpop.f32.mrb[0].mxu0
        %1615 = vmatprep.mubr.bf16.mxu0 0
        %1616 = vmatmul.mubr.bf16.gmra.mrb[0].mxu0 %v1148
        %v1617 = vpop.f32.mrb[0].mxu0
        %v1618 = vadd.f32 %v466, %v1617
        %v1619 = vpop.f32.mrb[0].mxu0
        %v1620 = vpop.f32.mrb[0].mxu0
        %v1621 = vadd.f32 %v466, %v1620
        %v1622 = vpop.f32.mrb[0].mxu0
        %1623 = vmatprep.mubr.bf16.mxu0 0
        %1624 = vmatmul.mubr.bf16.gmra.mrb[0].mxu0 %v1151
        %v1625 = vpop.f32.mrb[0].mxu0
        %v1626 = vadd.f32 %v466, %v1625
        %v1627 = vpop.f32.mrb[0].mxu0
        %v1628 = vpop.f32.mrb[0].mxu0
        %v1629 = vadd.f32 %v466, %v1628
        %v1630 = vpop.f32.mrb[0].mxu0
        %1631 = vmatprep.mubr.bf16.mxu0 0
        %1632 = vmatmul.mubr.bf16.gmra.mrb[0].mxu0 %v1154
        %v1633 = vpop.f32.mrb[0].mxu0
        %v1634 = vadd.f32 %v466, %v1633
        %v1635 = vpop.f32.mrb[0].mxu0
        %v1636 = vpop.f32.mrb[0].mxu0
        %v1637 = vadd.f32 %v466, %v1636
        %v1638 = vpop.f32.mrb[0].mxu0
        %1639 = vmatprep.mubr.bf16.mxu0 0
        %1640 = vmatmul.mubr.bf16.gmra.mrb[0].mxu0 %v1157
        %v1641 = vpop.f32.mrb[0].mxu0
        %v1642 = vadd.f32 %v466, %v1641
        %v1643 = vpop.f32.mrb[0].mxu0
        %v1644 = vpop.f32.mrb[0].mxu0
        %v1645 = vadd.f32 %v466, %v1644
        %v1646 = vpop.f32.mrb[0].mxu0
        %1647 = vmatprep.mubr.bf16.mxu0 0
        %1648 = vmatmul.mubr.bf16.gmra.mrb[0].mxu0 %v1160
        %v1649 = vpop.f32.mrb[0].mxu0
        %v1650 = vadd.f32 %v466, %v1649
        %v1651 = vpop.f32.mrb[0].mxu0
        %v1652 = vpop.f32.mrb[0].mxu0
        %v1653 = vadd.f32 %v466, %v1652
        %v1654 = vpop.f32.mrb[0].mxu0
        %1655 = vmatprep.mubr.bf16.mxu0 0
        %1656 = vmatmul.mubr.bf16.gmra.mrb[0].mxu0 %v1163
        %v1657 = vpop.f32.mrb[0].mxu0
        %v1658 = vadd.f32 %v466, %v1657
        %v1659 = vpop.f32.mrb[0].mxu0
        %v1660 = vpop.f32.mrb[0].mxu0
        %v1661 = vadd.f32 %v466, %v1660
        %v1662 = vpop.f32.mrb[0].mxu0
        %1663 = vmatprep.mubr.bf16.mxu0 0
        %1664 = vmatmul.mubr.bf16.gmra.mrb[0].mxu0 %v1166
        %v1665 = vpop.f32.mrb[0].mxu0
        %v1666 = vadd.f32 %v466, %v1665
        %v1667 = vpop.f32.mrb[0].mxu0
        %v1668 = vpop.f32.mrb[0].mxu0
        %v1669 = vadd.f32 %v466, %v1668
        %v1670 = vpop.f32.mrb[0].mxu0
        %1671 = vmatprep.mubr.bf16.mxu0 0
        %1672 = vmatmul.mubr.bf16.gmra.mrb[0].mxu0 %v1169
        %v1673 = vpop.f32.mrb[0].mxu0
        %v1674 = vadd.f32 %v466, %v1673
        %v1675 = vpop.f32.mrb[0].mxu0
        %v1676 = vpop.f32.mrb[0].mxu0
        %v1677 = vadd.f32 %v466, %v1676
        %v1678 = vpop.f32.mrb[0].mxu0
        %1679 = vmatprep.mubr.bf16.mxu0 0
        %1680 = vmatmul.mubr.bf16.gmra.mrb[0].mxu0 %v1172
        %v1681 = vpop.f32.mrb[0].mxu0
        %v1682 = vadd.f32 %v466, %v1681
        %v1683 = vpop.f32.mrb[0].mxu0
        %v1684 = vpop.f32.mrb[0].mxu0
        %v1685 = vadd.f32 %v466, %v1684
        %v1686 = vpop.f32.mrb[0].mxu0
        %1687 = vmatprep.mubr.bf16.mxu0 0
        %1688 = vmatmul.mubr.bf16.gmra.mrb[0].mxu0 %v1175
        %v1689 = vpop.f32.mrb[0].mxu0
        %v1690 = vadd.f32 %v466, %v1689
        %v1691 = vpop.f32.mrb[0].mxu0
        %v1692 = vpop.f32.mrb[0].mxu0
        %v1693 = vadd.f32 %v466, %v1692
        %v1694 = vpop.f32.mrb[0].mxu0
        %1695 = vmatprep.mubr.bf16.mxu0 0
        %1696 = vmatmul.mubr.bf16.gmra.mrb[0].mxu0 %v1178
        %v1697 = vpop.f32.mrb[0].mxu0
        %v1698 = vadd.f32 %v466, %v1697
        %v1699 = vpop.f32.mrb[0].mxu0
        %v1700 = vpop.f32.mrb[0].mxu0
        %v1701 = vadd.f32 %v466, %v1700
        %v1702 = vpop.f32.mrb[0].mxu0
        %1703 = vmatprep.mubr.bf16.mxu0 0
        %1704 = vmatmul.mubr.bf16.gmra.mrb[0].mxu0 %v1181
        %v1705 = vpop.f32.mrb[0].mxu0
        %v1706 = vadd.f32 %v466, %v1705
        %v1707 = vpop.f32.mrb[0].mxu0
        %v1708 = vpop.f32.mrb[0].mxu0
        %v1709 = vadd.f32 %v466, %v1708
        %v1710 = vpop.f32.mrb[0].mxu0
        %1711 = vmatprep.mubr.bf16.mxu0 0
        %1712 = vmatmul.mubr.bf16.gmra.mrb[0].mxu0 %v1184
        %v1713 = vpop.f32.mrb[0].mxu0
        %v1714 = vadd.f32 %v466, %v1713
        %v1715 = vpop.f32.mrb[0].mxu0
        %v1716 = vpop.f32.mrb[0].mxu0
        %v1717 = vadd.f32 %v466, %v1716
        %v1718 = vpop.f32.mrb[0].mxu0
        %1719 = vmatprep.mubr.bf16.mxu0 0
        %1720 = vmatmul.mubr.bf16.gmra.mrb[0].mxu0 %v1187
        %v1721 = vpop.f32.mrb[0].mxu0
        %v1722 = vadd.f32 %v466, %v1721
        %v1723 = vpop.f32.mrb[0].mxu0
        %v1724 = vpop.f32.mrb[0].mxu0
        %v1725 = vadd.f32 %v466, %v1724
        %v1726 = vpop.f32.mrb[0].mxu0
        %1727 = vmatprep.mubr.bf16.mxu0 0
        %1728 = vmatmul.mubr.bf16.gmra.mrb[0].mxu0 %v1190
        %v1729 = vpop.f32.mrb[0].mxu0
        %v1730 = vadd.f32 %v466, %v1729
        %v1731 = vpop.f32.mrb[0].mxu0
        %v1732 = vpop.f32.mrb[0].mxu0
        %v1733 = vadd.f32 %v466, %v1732
        %v1734 = vpop.f32.mrb[0].mxu0
        %1735 = vmatprep.mubr.bf16.mxu0 0
        %1736 = vmatmul.mubr.bf16.gmra.mrb[0].mxu0 %v1193
        %v1737 = vpop.f32.mrb[0].mxu0
        %v1738 = vadd.f32 %v466, %v1737
        %v1739 = vpop.f32.mrb[0].mxu0
        %v1740 = vpop.f32.mrb[0].mxu0
        %v1741 = vadd.f32 %v466, %v1740
        %v1742 = vpop.f32.mrb[0].mxu0
        %1743 = vmatprep.mubr.bf16.mxu0 0
        %1744 = vmatmul.mubr.bf16.gmra.mrb[0].mxu0 %v1196
        %v1745 = vpop.f32.mrb[0].mxu0
        %v1746 = vadd.f32 %v466, %v1745
        %v1747 = vpop.f32.mrb[0].mxu0
        %v1748 = vpop.f32.mrb[0].mxu0
        %v1749 = vadd.f32 %v466, %v1748
        %v1750 = vpop.f32.mrb[0].mxu0
        %1751 = vmatprep.mubr.bf16.mxu0 0
        %1752 = vmatmul.mubr.bf16.gmra.mrb[0].mxu0 %v1199
        %v1753 = vpop.f32.mrb[0].mxu0
        %v1754 = vadd.f32 %v466, %v1753
        %v1755 = vpop.f32.mrb[0].mxu0
        %v1756 = vpop.f32.mrb[0].mxu0
        %v1757 = vadd.f32 %v466, %v1756
        %v1758 = vpop.f32.mrb[0].mxu0
        %1759 = vmatprep.mubr.bf16.mxu0 0
        %1760 = vmatmul.mubr.bf16.gmra.mrb[0].mxu0 %v1202
        %v1761 = vpop.f32.mrb[0].mxu0
        %v1762 = vadd.f32 %v466, %v1761
        %v1763 = vpop.f32.mrb[0].mxu0
        %v1764 = vpop.f32.mrb[0].mxu0
        %v1765 = vadd.f32 %v466, %v1764
        %v1766 = vpop.f32.mrb[0].mxu0
        %1767 = vmatprep.mubr.bf16.mxu0 0
        %1768 = vmatmul.mubr.bf16.gmra.mrb[0].mxu0 %v1205
        %v1769 = vpop.f32.mrb[0].mxu0
        %v1770 = vadd.f32 %v466, %v1769
        %v1771 = vpop.f32.mrb[0].mxu0
        %v1772 = vpop.f32.mrb[0].mxu0
        %v1773 = vadd.f32 %v466, %v1772
        %v1774 = vpop.f32.mrb[0].mxu0
        %1775 = vmatprep.mubr.bf16.mxu0 0
        %1776 = vmatmul.mubr.bf16.gmra.mrb[0].mxu0 %v1208
        %v1777 = vpop.f32.mrb[0].mxu0
        %v1778 = vadd.f32 %v466, %v1777
        %v1779 = vpop.f32.mrb[0].mxu0
        %v1780 = vpop.f32.mrb[0].mxu0
        %v1781 = vadd.f32 %v466, %v1780
        %v1782 = vpop.f32.mrb[0].mxu0
        %1783 = vmatprep.mubr.bf16.mxu0 0
        %1784 = vmatmul.mubr.bf16.gmra.mrb[0].mxu0 %v1211
        %v1785 = vpop.f32.mrb[0].mxu0
        %v1786 = vadd.f32 %v466, %v1785
        %v1787 = vpop.f32.mrb[0].mxu0
        %v1788 = vpop.f32.mrb[0].mxu0
        %v1789 = vadd.f32 %v466, %v1788
        %v1790 = vpop.f32.mrb[0].mxu0
        %1791 = vmatprep.mubr.bf16.mxu0 0
        %1792 = vmatmul.mubr.bf16.gmra.mrb[0].mxu0 %v1214
        %v1793 = vpop.f32.mrb[0].mxu0
        %v1794 = vadd.f32 %v466, %v1793
        %v1795 = vpop.f32.mrb[0].mxu0
        %v1796 = vpop.f32.mrb[0].mxu0
        %v1797 = vadd.f32 %v466, %v1796
        %v1798 = vpop.f32.mrb[0].mxu0
        %1799 = vmatprep.mubr.bf16.mxu0 0
        %1800 = vmatmul.mubr.bf16.gmra.mrb[0].mxu0 %v1217
        %v1801 = vpop.f32.mrb[0].mxu0
        %v1802 = vadd.f32 %v466, %v1801
        %v1803 = vpop.f32.mrb[0].mxu0
        %v1804 = vpop.f32.mrb[0].mxu0
        %v1805 = vadd.f32 %v466, %v1804
        %v1806 = vpop.f32.mrb[0].mxu0
        %1807 = vmatprep.mubr.bf16.mxu0 0
        %1808 = vmatmul.mubr.bf16.gmra.mrb[0].mxu0 %v1220
        %v1809 = vpop.f32.mrb[0].mxu0
        %v1810 = vadd.f32 %v466, %v1809
        %v1811 = vpop.f32.mrb[0].mxu0
        %v1812 = vpop.f32.mrb[0].mxu0
        %v1813 = vadd.f32 %v466, %v1812
        %v1814 = vpop.f32.mrb[0].mxu0
        %1815 = vmatprep.mubr.bf16.mxu0 0
        %1816 = vmatmul.mubr.bf16.gmra.mrb[0].mxu0 %v1223
        %v1817 = vpop.f32.mrb[0].mxu0
        %v1818 = vadd.f32 %v466, %v1817
        %v1819 = vpop.f32.mrb[0].mxu0
        %v1820 = vpop.f32.mrb[0].mxu0
        %v1821 = vadd.f32 %v466, %v1820
        %v1822 = vpop.f32.mrb[0].mxu0
        %1823 = vmatprep.mubr.bf16.mxu0 0
        %1824 = vmatmul.mubr.bf16.gmra.mrb[0].mxu0 %v1226
        %v1825 = vpop.f32.mrb[0].mxu0
        %v1826 = vadd.f32 %v466, %v1825
        %v1827 = vpop.f32.mrb[0].mxu0
        %v1828 = vpop.f32.mrb[0].mxu0
        %v1829 = vadd.f32 %v466, %v1828
        %v1830 = vpop.f32.mrb[0].mxu0
        %1831 = vmatprep.mubr.bf16.mxu0 0
        %1832 = vmatmul.mubr.bf16.gmra.mrb[0].mxu0 %v1229
        %v1833 = vpop.f32.mrb[0].mxu0
        %v1834 = vadd.f32 %v466, %v1833
        %v1835 = vpop.f32.mrb[0].mxu0
        %v1836 = vpop.f32.mrb[0].mxu0
        %v1837 = vadd.f32 %v466, %v1836
        %v1838 = vpop.f32.mrb[0].mxu0
        %1839 = vmatprep.mubr.bf16.mxu0 0
        %1840 = vmatmul.mubr.bf16.gmra.mrb[0].mxu0 %v1232
        %v1841 = vpop.f32.mrb[0].mxu0
        %v1842 = vadd.f32 %v466, %v1841
        %v1843 = vpop.f32.mrb[0].mxu0
        %v1844 = vpop.f32.mrb[0].mxu0
        %v1845 = vadd.f32 %v466, %v1844
        %v1846 = vpop.f32.mrb[0].mxu0
        %1847 = vmatprep.mubr.bf16.mxu0 0
        %1848 = vmatmul.mubr.bf16.gmra.mrb[0].mxu0 %v1235
        %v1849 = vpop.f32.mrb[0].mxu0
        %v1850 = vadd.f32 %v466, %v1849
        %v1851 = vpop.f32.mrb[0].mxu0
        %v1852 = vpop.f32.mrb[0].mxu0
        %v1853 = vadd.f32 %v466, %v1852
        %v1854 = vpop.f32.mrb[0].mxu0
        %1855 = vmatprep.mubr.bf16.mxu0 0
        %1856 = vmatmul.mubr.bf16.gmra.mrb[0].mxu0 %v1238
        %v1857 = vpop.f32.mrb[0].mxu0
        %v1858 = vadd.f32 %v466, %v1857
        %v1859 = vpop.f32.mrb[0].mxu0
        %v1860 = vpop.f32.mrb[0].mxu0
        %v1861 = vadd.f32 %v466, %v1860
        %v1862 = vpop.f32.mrb[0].mxu0
        %1863 = vmatprep.mubr.bf16.mxu0 0
        %1864 = vmatmul.mubr.bf16.gmra.mrb[0].mxu0 %v1241
        %v1865 = vpop.f32.mrb[0].mxu0
        %v1866 = vadd.f32 %v466, %v1865
        %v1867 = vpop.f32.mrb[0].mxu0
        %v1868 = vpop.f32.mrb[0].mxu0
        %v1869 = vadd.f32 %v466, %v1868
        %v1870 = vpop.f32.mrb[0].mxu0
        %1871 = vmatprep.mubr.bf16.mxu0 0
        %1872 = vmatmul.mubr.bf16.gmra.mrb[0].mxu0 %v1244
        %v1873 = vpop.f32.mrb[0].mxu0
        %v1874 = vadd.f32 %v466, %v1873
        %v1875 = vpop.f32.mrb[0].mxu0
        %v1876 = vpop.f32.mrb[0].mxu0
        %v1877 = vadd.f32 %v466, %v1876
        %v1878 = vpop.f32.mrb[0].mxu0
        %1879 = vmatprep.mubr.bf16.mxu0 0
        %1880 = vmatmul.mubr.bf16.gmra.mrb[0].mxu0 %v1247
        %v1881 = vpop.f32.mrb[0].mxu0
        %v1882 = vadd.f32 %v466, %v1881
        %v1883 = vpop.f32.mrb[0].mxu0
        %v1884 = vpop.f32.mrb[0].mxu0
        %v1885 = vadd.f32 %v466, %v1884
        %v1886 = vpop.f32.mrb[0].mxu0
        %1887 = vmatprep.mubr.bf16.mxu0 0
        %1888 = vmatmul.mubr.bf16.gmra.mrb[0].mxu0 %v1250
        %v1889 = vpop.f32.mrb[0].mxu0
        %v1890 = vadd.f32 %v466, %v1889
        %v1891 = vpop.f32.mrb[0].mxu0
        %v1892 = vpop.f32.mrb[0].mxu0
        %v1893 = vadd.f32 %v466, %v1892
        %v1894 = vpop.f32.mrb[0].mxu0
        %1895 = vmatprep.mubr.bf16.mxu0 0
        %1896 = vmatmul.mubr.bf16.gmra.mrb[0].mxu0 %v1253
        %v1897 = vpop.f32.mrb[0].mxu0
        %v1898 = vadd.f32 %v466, %v1897
        %v1899 = vpop.f32.mrb[0].mxu0
        %v1900 = vpop.f32.mrb[0].mxu0
        %v1901 = vadd.f32 %v466, %v1900
        %v1902 = vpop.f32.mrb[0].mxu0
        %1903 = vmatprep.mubr.bf16.mxu0 0
        %1904 = vmatmul.mubr.bf16.gmra.mrb[0].mxu0 %v1256
        %v1905 = vpop.f32.mrb[0].mxu0
        %v1906 = vadd.f32 %v466, %v1905
        %v1907 = vpop.f32.mrb[0].mxu0
        %v1908 = vpop.f32.mrb[0].mxu0
        %v1909 = vadd.f32 %v466, %v1908
        %v1910 = vpop.f32.mrb[0].mxu0
        %1911 = vmatprep.mubr.bf16.mxu0 0
        %1912 = vmatmul.mubr.bf16.gmra.mrb[0].mxu0 %v1259
        %v1913 = vpop.f32.mrb[0].mxu0
        %v1914 = vadd.f32 %v466, %v1913
        %v1915 = vpop.f32.mrb[0].mxu0
        %v1916 = vpop.f32.mrb[0].mxu0
        %v1917 = vadd.f32 %v466, %v1916
        %v1918 = vpop.f32.mrb[0].mxu0
        %1919 = vmatprep.mubr.bf16.mxu0 0
        %1920 = vmatmul.mubr.bf16.gmra.mrb[0].mxu0 %v1262
        %v1921 = vpop.f32.mrb[0].mxu0
        %v1922 = vadd.f32 %v466, %v1921
        %v1923 = vpop.f32.mrb[0].mxu0
        %v1924 = vpop.f32.mrb[0].mxu0
        %v1925 = vadd.f32 %v466, %v1924
        %v1926 = vpop.f32.mrb[0].mxu0
        %1927 = vmatprep.mubr.bf16.mxu0 0
        %1928 = vmatmul.mubr.bf16.gmra.mrb[0].mxu0 %v1265
        %v1929 = vpop.f32.mrb[0].mxu0
        %v1930 = vadd.f32 %v466, %v1929
        %v1931 = vpop.f32.mrb[0].mxu0
        %v1932 = vpop.f32.mrb[0].mxu0
        %v1933 = vadd.f32 %v466, %v1932
        %v1934 = vpop.f32.mrb[0].mxu0
        %1935 = vmatprep.mubr.bf16.mxu0 0
        %1936 = vmatmul.mubr.bf16.gmra.mrb[0].mxu0 %v1268
        %v1937 = vpop.f32.mrb[0].mxu0
        %v1938 = vadd.f32 %v466, %v1937
        %v1939 = vpop.f32.mrb[0].mxu0
        %v1940 = vpop.f32.mrb[0].mxu0
        %v1941 = vadd.f32 %v466, %v1940
        %v1942 = vpop.f32.mrb[0].mxu0
        %1943 = vmatprep.mubr.bf16.mxu0 0
        %1944 = vmatmul.mubr.bf16.gmra.mrb[0].mxu0 %v1271
        %v1945 = vpop.f32.mrb[0].mxu0
        %v1946 = vadd.f32 %v466, %v1945
        %v1947 = vpop.f32.mrb[0].mxu0
        %v1948 = vpop.f32.mrb[0].mxu0
        %v1949 = vadd.f32 %v466, %v1948
        %v1950 = vpop.f32.mrb[0].mxu0
        %1951 = vmatprep.mubr.bf16.mxu0 0
        %1952 = vmatmul.mubr.bf16.gmra.mrb[0].mxu0 %v1274
        %v1953 = vpop.f32.mrb[0].mxu0
        %v1954 = vadd.f32 %v466, %v1953
        %v1955 = vpop.f32.mrb[0].mxu0
        %v1956 = vpop.f32.mrb[0].mxu0
        %v1957 = vadd.f32 %v466, %v1956
        %v1958 = vpop.f32.mrb[0].mxu0
        %1959 = vmatprep.mubr.bf16.mxu0 0
        %1960 = vmatmul.mubr.bf16.gmra.mrb[0].mxu0 %v1277
        %v1961 = vpop.f32.mrb[0].mxu0
        %v1962 = vadd.f32 %v466, %v1961
        %v1963 = vpop.f32.mrb[0].mxu0
        %v1964 = vpop.f32.mrb[0].mxu0
        %v1965 = vadd.f32 %v466, %v1964
        %v1966 = vpop.f32.mrb[0].mxu0
        %1967 = vmatprep.mubr.bf16.mxu0 0
        %1968 = vmatmul.mubr.bf16.gmra.mrb[0].mxu0 %v1280
        %v1969 = vpop.f32.mrb[0].mxu0
        %v1970 = vadd.f32 %v466, %v1969
        %v1971 = vpop.f32.mrb[0].mxu0
        %v1972 = vpop.f32.mrb[0].mxu0
        %v1973 = vadd.f32 %v466, %v1972
        %v1974 = vpop.f32.mrb[0].mxu0
        %1975 = vmatprep.mubr.bf16.mxu0 0
        %1976 = vmatmul.mubr.bf16.gmra.mrb[0].mxu0 %v1283
        %v1977 = vpop.f32.mrb[0].mxu0
        %v1978 = vadd.f32 %v466, %v1977
        %v1979 = vpop.f32.mrb[0].mxu0
        %v1980 = vpop.f32.mrb[0].mxu0
        %v1981 = vadd.f32 %v466, %v1980
        %v1982 = vpop.f32.mrb[0].mxu0
        %1983 = vmatprep.mubr.bf16.mxu0 0
        %1984 = vmatmul.mubr.bf16.gmra.mrb[0].mxu0 %v1286
        %v1985 = vpop.f32.mrb[0].mxu0
        %v1986 = vadd.f32 %v466, %v1985
        %v1987 = vpop.f32.mrb[0].mxu0
        %v1988 = vpop.f32.mrb[0].mxu0
        %v1989 = vadd.f32 %v466, %v1988
        %v1990 = vpop.f32.mrb[0].mxu0
        %1991 = vmatprep.mubr.bf16.mxu0 0
        %1992 = vmatmul.mubr.bf16.gmra.mrb[0].mxu0 %v1289
        %v1993 = vpop.f32.mrb[0].mxu0
        %v1994 = vadd.f32 %v466, %v1993
        %v1995 = vpop.f32.mrb[0].mxu0
        %v1996 = vpop.f32.mrb[0].mxu0
        %v1997 = vadd.f32 %v466, %v1996
        %v1998 = vpop.f32.mrb[0].mxu0
        %1999 = vmatprep.mubr.bf16.mxu0 0
        %2000 = vmatmul.mubr.bf16.gmra.mrb[0].mxu0 %v1292
        %v2001 = vpop.f32.mrb[0].mxu0
        %v2002 = vadd.f32 %v466, %v2001
        %v2003 = vpop.f32.mrb[0].mxu0
        %v2004 = vpop.f32.mrb[0].mxu0
        %v2005 = vadd.f32 %v466, %v2004
        %v2006 = vpop.f32.mrb[0].mxu0
        %2007 = vmatprep.mubr.bf16.mxu0 0
        %2008 = vmatmul.mubr.bf16.gmra.mrb[0].mxu0 %v1295
        %v2009 = vpop.f32.mrb[0].mxu0
        %v2010 = vadd.f32 %v466, %v2009
        %v2011 = vpop.f32.mrb[0].mxu0
        %v2012 = vpop.f32.mrb[0].mxu0
        %v2013 = vadd.f32 %v466, %v2012
        %v2014 = vpop.f32.mrb[0].mxu0
        %2015 = vmatprep.mubr.bf16.mxu0 0
        %2016 = vmatmul.mubr.bf16.gmra.mrb[0].mxu0 %v1298
        %v2017 = vpop.f32.mrb[0].mxu0
        %v2018 = vadd.f32 %v466, %v2017
        %v2019 = vpop.f32.mrb[0].mxu0
        %v2020 = vpop.f32.mrb[0].mxu0
        %v2021 = vadd.f32 %v466, %v2020
        %v2022 = vpop.f32.mrb[0].mxu0
        %2023 = vmatprep.mubr.bf16.mxu0 0
        %2024 = vmatmul.mubr.bf16.gmra.mrb[0].mxu0 %v1301
        %v2025 = vpop.f32.mrb[0].mxu0
        %v2026 = vadd.f32 %v466, %v2025
        %v2027 = vpop.f32.mrb[0].mxu0
        %v2028 = vpop.f32.mrb[0].mxu0
        %v2029 = vadd.f32 %v466, %v2028
        %v2030 = vpop.f32.mrb[0].mxu0
        %2031 = vmatprep.mubr.bf16.mxu0 0
        %2032 = vmatmul.mubr.bf16.gmra.mrb[0].mxu0 %v1304
        %v2033 = vpop.f32.mrb[0].mxu0
        %v2034 = vadd.f32 %v466, %v2033
        %v2035 = vpop.f32.mrb[0].mxu0
        %v2036 = vpop.f32.mrb[0].mxu0
        %v2037 = vadd.f32 %v466, %v2036
        %v2038 = vpop.f32.mrb[0].mxu0
        %2039 = vmatprep.mubr.bf16.mxu0 0
        %2040 = vmatmul.mubr.bf16.gmra.mrb[0].mxu0 %v1307
        %v2041 = vpop.f32.mrb[0].mxu0
        %v2042 = vadd.f32 %v466, %v2041
        %v2043 = vpop.f32.mrb[0].mxu0
        %v2044 = vpop.f32.mrb[0].mxu0
        %v2045 = vadd.f32 %v466, %v2044
        %v2046 = vpop.f32.mrb[0].mxu0
        %2047 = vmatprep.mubr.bf16.mxu0 0
        %2048 = vmatmul.mubr.bf16.gmra.mrb[0].mxu0 %v1310
        %v2049 = vpop.f32.mrb[0].mxu0
        %v2050 = vadd.f32 %v466, %v2049
        %v2051 = vpop.f32.mrb[0].mxu0
        %v2052 = vpop.f32.mrb[0].mxu0
        %v2053 = vadd.f32 %v466, %v2052
        %v2054 = vpop.f32.mrb[0].mxu0
        %2055 = vmatprep.mubr.bf16.mxu0 0
        %2056 = vmatmul.mubr.bf16.gmra.mrb[0].mxu0 %v1313
        %v2057 = vpop.f32.mrb[0].mxu0
        %v2058 = vadd.f32 %v466, %v2057
        %v2059 = vpop.f32.mrb[0].mxu0
        %v2060 = vpop.f32.mrb[0].mxu0
        %v2061 = vadd.f32 %v466, %v2060
        %v2062 = vpop.f32.mrb[0].mxu0
        %2063 = vmatprep.mubr.bf16.mxu0 0
        %2064 = vmatmul.mubr.bf16.gmra.mrb[0].mxu0 %v1316
        %v2065 = vpop.f32.mrb[0].mxu0
        %v2066 = vadd.f32 %v466, %v2065
        %v2067 = vpop.f32.mrb[0].mxu0
        %v2068 = vpop.f32.mrb[0].mxu0
        %v2069 = vadd.f32 %v466, %v2068
        %v2070 = vpop.f32.mrb[0].mxu0
        %2071 = vmatprep.mubr.bf16.mxu0 0
        %2072 = vmatmul.mubr.bf16.gmra.mrb[0].mxu0 %v1319
        %v2073 = vpop.f32.mrb[0].mxu0
        %v2074 = vadd.f32 %v466, %v2073
        %v2075 = vpop.f32.mrb[0].mxu0
        %v2076 = vpop.f32.mrb[0].mxu0
        %v2077 = vadd.f32 %v466, %v2076
        %v2078 = vpop.f32.mrb[0].mxu0
        %2079 = vmatprep.mubr.bf16.mxu0 0
        %2080 = vmatmul.mubr.bf16.gmra.mrb[0].mxu0 %v1322
        %v2081 = vpop.f32.mrb[0].mxu0
        %v2082 = vadd.f32 %v466, %v2081
        %v2083 = vpop.f32.mrb[0].mxu0
        %v2084 = vpop.f32.mrb[0].mxu0
        %v2085 = vadd.f32 %v466, %v2084
        %v2086 = vpop.f32.mrb[0].mxu0
        %2087 = vmatprep.mubr.bf16.mxu0 0
        %2088 = vmatmul.mubr.bf16.gmra.mrb[0].mxu0 %v1325
        %v2089 = vpop.f32.mrb[0].mxu0
        %v2090 = vadd.f32 %v466, %v2089
        %v2091 = vpop.f32.mrb[0].mxu0
        %v2092 = vpop.f32.mrb[0].mxu0
        %v2093 = vadd.f32 %v466, %v2092
        %v2094 = vpop.f32.mrb[0].mxu0
        %2095 = vmatprep.mubr.bf16.mxu0 0
        %2096 = vmatmul.mubr.bf16.gmra.mrb[0].mxu0 %v1328
        %v2097 = vpop.f32.mrb[0].mxu0
        %v2098 = vadd.f32 %v466, %v2097
        %v2099 = vpop.f32.mrb[0].mxu0
        %v2100 = vpop.f32.mrb[0].mxu0
        %v2101 = vadd.f32 %v466, %v2100
        %v2102 = vpop.f32.mrb[0].mxu0
        %2103 = vmatprep.mubr.bf16.mxu0 0
        %2104 = vmatmul.mubr.bf16.gmra.mrb[0].mxu0 %v1331
        %v2105 = vpop.f32.mrb[0].mxu0
        %v2106 = vadd.f32 %v466, %v2105
        %v2107 = vpop.f32.mrb[0].mxu0
        %v2108 = vpop.f32.mrb[0].mxu0
        %v2109 = vadd.f32 %v466, %v2108
        %v2110 = vpop.f32.mrb[0].mxu0
        %2111 = vmatprep.mubr.bf16.mxu0 0
        %2112 = vmatmul.mubr.bf16.gmra.mrb[0].mxu0 %v1334
        %v2113 = vpop.f32.mrb[0].mxu0
        %v2114 = vadd.f32 %v466, %v2113
        %v2115 = vpop.f32.mrb[0].mxu0
        %v2116 = vpop.f32.mrb[0].mxu0
        %v2117 = vadd.f32 %v466, %v2116
        %v2118 = vpop.f32.mrb[0].mxu0
        %2119 = vmatprep.mubr.bf16.mxu0 0
        %2120 = vmatmul.mubr.bf16.gmra.mrb[0].mxu0 %v1337
        %v2121 = vpop.f32.mrb[0].mxu0
        %v2122 = vadd.f32 %v466, %v2121
        %v2123 = vpop.f32.mrb[0].mxu0
        %v2124 = vpop.f32.mrb[0].mxu0
        %v2125 = vadd.f32 %v466, %v2124
        %v2126 = vpop.f32.mrb[0].mxu0
        %2127 = vmatprep.mubr.bf16.mxu0 0
        %2128 = vmatmul.mubr.bf16.gmra.mrb[0].mxu0 %v1340
        %v2129 = vpop.f32.mrb[0].mxu0
        %v2130 = vadd.f32 %v466, %v2129
        %v2131 = vpop.f32.mrb[0].mxu0
        %v2132 = vpop.f32.mrb[0].mxu0
        %v2133 = vadd.f32 %v466, %v2132
        %v2134 = vpop.f32.mrb[0].mxu0
        %2135 = vmatprep.mubr.bf16.mxu0 0
        %2136 = vmatmul.mubr.bf16.gmra.mrb[0].mxu0 %v1343
        %v2137 = vpop.f32.mrb[0].mxu0
        %v2138 = vadd.f32 %v466, %v2137
        %v2139 = vpop.f32.mrb[0].mxu0
        %v2140 = vpop.f32.mrb[0].mxu0
        %v2141 = vadd.f32 %v466, %v2140
        %v2142 = vpop.f32.mrb[0].mxu0
        %2143 = vmatprep.mubr.bf16.mxu0 0
        %2144 = vmatmul.mubr.bf16.gmra.mrb[0].mxu0 %v1346
        %v2145 = vpop.f32.mrb[0].mxu0
        %v2146 = vadd.f32 %v466, %v2145
        %v2147 = vpop.f32.mrb[0].mxu0
        %v2148 = vpop.f32.mrb[0].mxu0
        %v2149 = vadd.f32 %v466, %v2148
        %v2150 = vpop.f32.mrb[0].mxu0
        %2151 = vmatprep.mubr.bf16.mxu0 0
        %2152 = vmatmul.mubr.bf16.gmra.mrb[0].mxu0 %v1349
        %v2153 = vpop.f32.mrb[0].mxu0
        %v2154 = vadd.f32 %v466, %v2153
        %v2155 = vpop.f32.mrb[0].mxu0
        %v2156 = vpop.f32.mrb[0].mxu0
        %v2157 = vadd.f32 %v466, %v2156
        %v2158 = vpop.f32.mrb[0].mxu0
        %2159 = vmatprep.mubr.bf16.mxu0 0
        %2160 = vmatmul.mubr.bf16.gmra.mrb[0].mxu0 %v1352
        %v2161 = vpop.f32.mrb[0].mxu0
        %v2162 = vadd.f32 %v466, %v2161
        %v2163 = vpop.f32.mrb[0].mxu0
        %v2164 = vpop.f32.mrb[0].mxu0
        %v2165 = vadd.f32 %v466, %v2164
        %v2166 = vpop.f32.mrb[0].mxu0
        %2167 = vmatprep.mubr.bf16.mxu0 0
        %2168 = vmatmul.mubr.bf16.gmra.mrb[0].mxu0 %v1355
        %v2169 = vpop.f32.mrb[0].mxu0
        %v2170 = vadd.f32 %v466, %v2169
        %v2171 = vpop.f32.mrb[0].mxu0
        %v2172 = vpop.f32.mrb[0].mxu0
        %v2173 = vadd.f32 %v466, %v2172
        %v2174 = vpop.f32.mrb[0].mxu0
        %2175 = vmatprep.mubr.bf16.mxu0 0
        %2176 = vmatmul.mubr.bf16.gmra.mrb[0].mxu0 %v1358
        %v2177 = vpop.f32.mrb[0].mxu0
        %v2178 = vadd.f32 %v466, %v2177
        %v2179 = vpop.f32.mrb[0].mxu0
        %v2180 = vpop.f32.mrb[0].mxu0
        %v2181 = vadd.f32 %v466, %v2180
        %v2182 = vpop.f32.mrb[0].mxu0
        %2183 = vmatprep.mubr.bf16.mxu0 0
        %2184 = vmatmul.mubr.bf16.gmra.mrb[0].mxu0 %v1361
        %v2185 = vpop.f32.mrb[0].mxu0
        %v2186 = vadd.f32 %v466, %v2185
        %v2187 = vpop.f32.mrb[0].mxu0
        %v2188 = vpop.f32.mrb[0].mxu0
        %v2189 = vadd.f32 %v466, %v2188
        %v2190 = vpop.f32.mrb[0].mxu0
        %2191 = vmatprep.mubr.bf16.mxu0 0
        %2192 = vmatmul.mubr.bf16.gmra.mrb[0].mxu0 %v1364
        %v2193 = vpop.f32.mrb[0].mxu0
        %v2194 = vadd.f32 %v466, %v2193
        %v2195 = vpop.f32.mrb[0].mxu0
        %v2196 = vpop.f32.mrb[0].mxu0
        %v2197 = vadd.f32 %v466, %v2196
        %v2198 = vpop.f32.mrb[0].mxu0
        %2199 = vmatprep.mubr.bf16.mxu0 0
        %2200 = vmatmul.mubr.bf16.gmra.mrb[0].mxu0 %v1367
        %v2201 = vpop.f32.mrb[0].mxu0
        %v2202 = vadd.f32 %v466, %v2201
        %v2203 = vpop.f32.mrb[0].mxu0
        %v2204 = vpop.f32.mrb[0].mxu0
        %v2205 = vadd.f32 %v466, %v2204
        %v2206 = vpop.f32.mrb[0].mxu0
        %2207 = vmatprep.mubr.bf16.mxu0 0
        %2208 = vmatmul.mubr.bf16.gmra.mrb[0].mxu0 %v1370
        %v2209 = vpop.f32.mrb[0].mxu0
        %v2210 = vadd.f32 %v466, %v2209
        %v2211 = vpop.f32.mrb[0].mxu0
        %v2212 = vpop.f32.mrb[0].mxu0
        %v2213 = vadd.f32 %v466, %v2212
        %v2214 = vpop.f32.mrb[0].mxu0
        %2215 = vmatprep.mubr.bf16.mxu0 0
        %2216 = vmatmul.mubr.bf16.gmra.mrb[0].mxu0 %v1373
        %v2217 = vpop.f32.mrb[0].mxu0
        %v2218 = vadd.f32 %v466, %v2217
        %v2219 = vpop.f32.mrb[0].mxu0
        %v2220 = vpop.f32.mrb[0].mxu0
        %v2221 = vadd.f32 %v466, %v2220
        %v2222 = vpop.f32.mrb[0].mxu0
        %2223 = vmatprep.mubr.bf16.mxu0 0
        %2224 = vmatmul.mubr.bf16.gmra.mrb[0].mxu0 %v1376
        %v2225 = vpop.f32.mrb[0].mxu0
        %v2226 = vadd.f32 %v466, %v2225
        %v2227 = vpop.f32.mrb[0].mxu0
        %v2228 = vpop.f32.mrb[0].mxu0
        %v2229 = vadd.f32 %v466, %v2228
        %v2230 = vpop.f32.mrb[0].mxu0
        %2231 = vmatprep.mubr.bf16.mxu0 0
        %2232 = vmatmul.mubr.bf16.gmra.mrb[0].mxu0 %v1379
        %v2233 = vpop.f32.mrb[0].mxu0
        %v2234 = vadd.f32 %v466, %v2233
        %v2235 = vpop.f32.mrb[0].mxu0
        %v2236 = vpop.f32.mrb[0].mxu0
        %v2237 = vadd.f32 %v466, %v2236
        %v2238 = vpop.f32.mrb[0].mxu0
        %2239 = vmatprep.mubr.bf16.mxu0 0
        %2240 = vmatmul.mubr.bf16.gmra.mrb[0].mxu0 %v1382
        %v2241 = vpop.f32.mrb[0].mxu0
        %v2242 = vadd.f32 %v466, %v2241
        %v2243 = vpop.f32.mrb[0].mxu0
        %v2244 = vpop.f32.mrb[0].mxu0
        %v2245 = vadd.f32 %v466, %v2244
        %v2246 = vpop.f32.mrb[0].mxu0
        %2247 = vmatprep.mubr.bf16.mxu0 0
        %2248 = vmatmul.mubr.bf16.gmra.mrb[0].mxu0 %v1385
        %v2249 = vpop.f32.mrb[0].mxu0
        %v2250 = vadd.f32 %v466, %v2249
        %v2251 = vpop.f32.mrb[0].mxu0
        %v2252 = vpop.f32.mrb[0].mxu0
        %v2253 = vadd.f32 %v466, %v2252
        %v2254 = vpop.f32.mrb[0].mxu0
        %2255 = vmatprep.mubr.bf16.mxu0 0
        %2256 = vmatmul.mubr.bf16.gmra.mrb[0].mxu0 %v1388
        %v2257 = vpop.f32.mrb[0].mxu0
        %v2258 = vadd.f32 %v466, %v2257
        %v2259 = vpop.f32.mrb[0].mxu0
        %v2260 = vpop.f32.mrb[0].mxu0
        %v2261 = vadd.f32 %v466, %v2260
        %v2262 = vpop.f32.mrb[0].mxu0
        %2263 = vmatprep.mubr.bf16.mxu0 0
        %2264 = vmatmul.mubr.bf16.gmra.mrb[0].mxu0 %v1391
        %v2265 = vpop.f32.mrb[0].mxu0
        %v2266 = vadd.f32 %v466, %v2265
        %v2267 = vpop.f32.mrb[0].mxu0
        %v2268 = vpop.f32.mrb[0].mxu0
        %v2269 = vadd.f32 %v466, %v2268
        %v2270 = vpop.f32.mrb[0].mxu0
        %2271 = vmatprep.mubr.bf16.mxu0 0
        %2272 = vmatmul.mubr.bf16.gmra.mrb[0].mxu0 %v1394
        %v2273 = vpop.f32.mrb[0].mxu0
        %v2274 = vadd.f32 %v466, %v2273
        %v2275 = vpop.f32.mrb[0].mxu0
        %v2276 = vpop.f32.mrb[0].mxu0
        %v2277 = vadd.f32 %v466, %v2276
        %v2278 = vpop.f32.mrb[0].mxu0
        %2279 = vmatprep.mubr.bf16.mxu0 0
        %2280 = vmatmul.mubr.bf16.gmra.mrb[0].mxu0 %v1397
        %v2281 = vpop.f32.mrb[0].mxu0
        %v2282 = vadd.f32 %v466, %v2281
        %v2283 = vpop.f32.mrb[0].mxu0
        %v2284 = vpop.f32.mrb[0].mxu0
        %v2285 = vadd.f32 %v466, %v2284
        %v2286 = vpop.f32.mrb[0].mxu0
        %2287 = vmatprep.mubr.bf16.mxu0 0
        %2288 = vmatmul.mubr.bf16.gmra.mrb[0].mxu0 %v1400
        %v2289 = vpop.f32.mrb[0].mxu0
        %v2290 = vadd.f32 %v466, %v2289
        %v2291 = vpop.f32.mrb[0].mxu0
        %v2292 = vpop.f32.mrb[0].mxu0
        %v2293 = vadd.f32 %v466, %v2292
        %v2294 = vpop.f32.mrb[0].mxu0
        %2295 = vmatprep.mubr.bf16.mxu0 0
        %2296 = vmatmul.mubr.bf16.gmra.mrb[0].mxu0 %v1403
        %v2297 = vpop.f32.mrb[0].mxu0
        %v2298 = vadd.f32 %v466, %v2297
        %v2299 = vpop.f32.mrb[0].mxu0
        %v2300 = vpop.f32.mrb[0].mxu0
        %v2301 = vadd.f32 %v466, %v2300
        %v2302 = vpop.f32.mrb[0].mxu0
        %2303 = vmatprep.mubr.bf16.mxu0 0
        %2304 = vmatmul.mubr.bf16.gmra.mrb[0].mxu0 %v1406
        %v2305 = vpop.f32.mrb[0].mxu0
        %v2306 = vadd.f32 %v466, %v2305
        %v2307 = vpop.f32.mrb[0].mxu0
        %v2308 = vpop.f32.mrb[0].mxu0
        %v2309 = vadd.f32 %v466, %v2308
        %v2310 = vpop.f32.mrb[0].mxu0
        %2311 = vmatprep.mubr.bf16.mxu0 0
        %2312 = vmatmul.mubr.bf16.gmra.mrb[0].mxu0 %v1409
        %v2313 = vpop.f32.mrb[0].mxu0
        %v2314 = vadd.f32 %v466, %v2313
        %v2315 = vpop.f32.mrb[0].mxu0
        %v2316 = vpop.f32.mrb[0].mxu0
        %v2317 = vadd.f32 %v466, %v2316
        %v2318 = vpop.f32.mrb[0].mxu0
        %2319 = vmatprep.mubr.bf16.mxu0 0
        %2320 = vmatmul.mubr.bf16.gmra.mrb[0].mxu0 %v1412
        %v2321 = vpop.f32.mrb[0].mxu0
        %v2322 = vadd.f32 %v466, %v2321
        %v2323 = vpop.f32.mrb[0].mxu0
        %v2324 = vpop.f32.mrb[0].mxu0
        %v2325 = vadd.f32 %v466, %v2324
        %v2326 = vpop.f32.mrb[0].mxu0
        %2327 = vmatprep.mubr.bf16.mxu0 0
        %2328 = vmatmul.mubr.bf16.gmra.mrb[0].mxu0 %v1415
        %v2329 = vpop.f32.mrb[0].mxu0
        %v2330 = vadd.f32 %v466, %v2329
        %v2331 = vpop.f32.mrb[0].mxu0
        %v2332 = vpop.f32.mrb[0].mxu0
        %v2333 = vadd.f32 %v466, %v2332
        %v2334 = vpop.f32.mrb[0].mxu0
        %2335 = vmatprep.mubr.bf16.mxu0 0
        %2336 = vmatmul.mubr.bf16.gmra.mrb[0].mxu0 %v1418
        %v2337 = vpop.f32.mrb[0].mxu0
        %v2338 = vadd.f32 %v466, %v2337
        %v2339 = vpop.f32.mrb[0].mxu0
        %v2340 = vpop.f32.mrb[0].mxu0
        %v2341 = vadd.f32 %v466, %v2340
        %v2342 = vpop.f32.mrb[0].mxu0
        %2343 = vmatprep.mubr.bf16.mxu0 0
        %2344 = vmatmul.mubr.bf16.gmra.mrb[0].mxu0 %v1421
        %v2345 = vpop.f32.mrb[0].mxu0
        %v2346 = vadd.f32 %v466, %v2345
        %v2347 = vpop.f32.mrb[0].mxu0
        %v2348 = vpop.f32.mrb[0].mxu0
        %v2349 = vadd.f32 %v466, %v2348
        %v2350 = vpop.f32.mrb[0].mxu0
        %2351 = vmatprep.mubr.bf16.mxu0 0
        %2352 = vmatmul.mubr.bf16.gmra.mrb[0].mxu0 %v1424
        %v2353 = vpop.f32.mrb[0].mxu0
        %v2354 = vadd.f32 %v466, %v2353
        %v2355 = vpop.f32.mrb[0].mxu0
        %v2356 = vpop.f32.mrb[0].mxu0
        %v2357 = vadd.f32 %v466, %v2356
        %v2358 = vpop.f32.mrb[0].mxu0
        %2359 = vmatprep.mubr.bf16.mxu0 0
        %2360 = vmatmul.mubr.bf16.gmra.mrb[0].mxu0 %v1427
        %v2361 = vpop.f32.mrb[0].mxu0
        %v2362 = vadd.f32 %v466, %v2361
        %v2363 = vpop.f32.mrb[0].mxu0
        %v2364 = vpop.f32.mrb[0].mxu0
        %v2365 = vadd.f32 %v466, %v2364
        %v2366 = vpop.f32.mrb[0].mxu0
        %2367 = vmatprep.mubr.bf16.mxu0 0
        %2368 = vmatmul.mubr.bf16.gmra.mrb[0].mxu0 %v1430
        %v2369 = vpop.f32.mrb[0].mxu0
        %v2370 = vadd.f32 %v466, %v2369
        %v2371 = vpop.f32.mrb[0].mxu0
        %v2372 = vpop.f32.mrb[0].mxu0
        %v2373 = vadd.f32 %v466, %v2372
        %v2374 = vpop.f32.mrb[0].mxu0
        %2375 = vmatprep.mubr.bf16.mxu0 0
        %2376 = vmatmul.mubr.bf16.gmra.mrb[0].mxu0 %v1433
        %v2377 = vpop.f32.mrb[0].mxu0
        %v2378 = vadd.f32 %v466, %v2377
        %v2379 = vpop.f32.mrb[0].mxu0
        %v2380 = vpop.f32.mrb[0].mxu0
        %v2381 = vadd.f32 %v466, %v2380
        %v2382 = vpop.f32.mrb[0].mxu0
        %2383 = vmatprep.mubr.bf16.mxu0 0
        %2384 = vmatmul.mubr.bf16.gmra.mrb[0].mxu0 %v1436
        %v2385 = vpop.f32.mrb[0].mxu0
        %v2386 = vadd.f32 %v466, %v2385
        %v2387 = vpop.f32.mrb[0].mxu0
        %v2388 = vpop.f32.mrb[0].mxu0
        %v2389 = vadd.f32 %v466, %v2388
        %v2390 = vpop.f32.mrb[0].mxu0
        %2391 = vmatprep.mubr.bf16.mxu0 0
        %2392 = vmatmul.mubr.bf16.gmra.mrb[0].mxu0 %v1439
        %v2393 = vpop.f32.mrb[0].mxu0
        %v2394 = vadd.f32 %v466, %v2393
        %v2395 = vpop.f32.mrb[0].mxu0
        %v2396 = vpop.f32.mrb[0].mxu0
        %v2397 = vadd.f32 %v466, %v2396
        %v2398 = vpop.f32.mrb[0].mxu0
        %2399 = vmatprep.mubr.bf16.mxu0 0
        %2400 = vmatmul.mubr.bf16.gmra.mrb[0].mxu0 %v1442
        %v2401 = vpop.f32.mrb[0].mxu0
        %v2402 = vadd.f32 %v466, %v2401
        %v2403 = vpop.f32.mrb[0].mxu0
        %v2404 = vpop.f32.mrb[0].mxu0
        %v2405 = vadd.f32 %v466, %v2404
        %v2406 = vpop.f32.mrb[0].mxu0
        %2407 = vmatprep.mubr.bf16.mxu0 0
        %2408 = vmatmul.mubr.bf16.gmra.mrb[0].mxu0 %v1445
        %v2409 = vpop.f32.mrb[0].mxu0
        %v2410 = vadd.f32 %v466, %v2409
        %v2411 = vpop.f32.mrb[0].mxu0
        %v2412 = vpop.f32.mrb[0].mxu0
        %v2413 = vadd.f32 %v466, %v2412
        %v2414 = vpop.f32.mrb[0].mxu0
        %2415 = vmatprep.mubr.bf16.mxu0 0
        %2416 = vmatmul.mubr.bf16.gmra.mrb[0].mxu0 %v1448
        %v2417 = vpop.f32.mrb[0].mxu0
        %v2418 = vadd.f32 %v466, %v2417
        %v2419 = vpop.f32.mrb[0].mxu0
        %v2420 = vpop.f32.mrb[0].mxu0
        %v2421 = vadd.f32 %v466, %v2420
        %v2422 = vpop.f32.mrb[0].mxu0
        %2423 = vmatprep.mubr.bf16.mxu0 0
        %2424 = vmatmul.mubr.bf16.gmra.mrb[0].mxu0 %v1451
        %v2425 = vpop.f32.mrb[0].mxu0
        %v2426 = vadd.f32 %v466, %v2425
        %v2427 = vpop.f32.mrb[0].mxu0
        %v2428 = vpop.f32.mrb[0].mxu0
        %v2429 = vadd.f32 %v466, %v2428
        %v2430 = vpop.f32.mrb[0].mxu0
        %2431 = vmatprep.mubr.bf16.mxu0 0
        %2432 = vmatmul.mubr.bf16.gmra.mrb[0].mxu0 %v1454
        %v2433 = vpop.f32.mrb[0].mxu0
        %v2434 = vadd.f32 %v466, %v2433
        %v2435 = vpop.f32.mrb[0].mxu0
        %v2436 = vpop.f32.mrb[0].mxu0
        %v2437 = vadd.f32 %v466, %v2436
        %v2438 = vpop.f32.mrb[0].mxu0
        %2439 = vmatprep.mubr.bf16.mxu0 0
        %2440 = vmatmul.mubr.bf16.gmra.mrb[0].mxu0 %v1457
        %v2441 = vpop.f32.mrb[0].mxu0
        %v2442 = vadd.f32 %v466, %v2441
        %v2443 = vpop.f32.mrb[0].mxu0
        %v2444 = vpop.f32.mrb[0].mxu0
        %v2445 = vadd.f32 %v466, %v2444
        %v2446 = vpop.f32.mrb[0].mxu0
        %2447 = vmatprep.mubr.bf16.mxu0 0
        %2448 = vmatmul.mubr.bf16.gmra.mrb[0].mxu0 %v1460
        %v2449 = vpop.f32.mrb[0].mxu0
        %v2450 = vadd.f32 %v466, %v2449
        %v2451 = vpop.f32.mrb[0].mxu0
        %v2452 = vpop.f32.mrb[0].mxu0
        %v2453 = vadd.f32 %v466, %v2452
        %v2454 = vpop.f32.mrb[0].mxu0
        %2455 = vmatprep.mubr.bf16.mxu0 0
        %2456 = vmatmul.mubr.bf16.gmra.mrb[0].mxu0 %v1463
        %v2457 = vpop.f32.mrb[0].mxu0
        %v2458 = vadd.f32 %v466, %v2457
        %v2459 = vpop.f32.mrb[0].mxu0
        %v2460 = vpop.f32.mrb[0].mxu0
        %v2461 = vadd.f32 %v466, %v2460
        %v2462 = vpop.f32.mrb[0].mxu0
        %2463 = vmatprep.mubr.bf16.mxu0 0
        %2464 = vmatmul.mubr.bf16.gmra.mrb[0].mxu0 %v1466
        %v2465 = vpop.f32.mrb[0].mxu0
        %v2466 = vadd.f32 %v466, %v2465
        %v2467 = vpop.f32.mrb[0].mxu0
        %v2468 = vpop.f32.mrb[0].mxu0
        %v2469 = vadd.f32 %v466, %v2468
        %v2470 = vpop.f32.mrb[0].mxu0
        %2471 = vmatprep.mubr.bf16.mxu0 0
        %2472 = vmatmul.mubr.bf16.gmra.mrb[0].mxu0 %v1469
        %v2473 = vpop.f32.mrb[0].mxu0
        %v2474 = vadd.f32 %v466, %v2473
        %v2475 = vpop.f32.mrb[0].mxu0
        %v2476 = vpop.f32.mrb[0].mxu0
        %v2477 = vadd.f32 %v466, %v2476
        %v2478 = vpop.f32.mrb[0].mxu0
        %2479 = vmatprep.mubr.bf16.mxu0 0
        %2480 = vmatmul.mubr.bf16.gmra.mrb[0].mxu0 %v1472
        %v2481 = vpop.f32.mrb[0].mxu0
        %v2482 = vadd.f32 %v466, %v2481
        %v2483 = vpop.f32.mrb[0].mxu0
        %v2484 = vpop.f32.mrb[0].mxu0
        %v2485 = vadd.f32 %v466, %v2484
        %v2486 = vpop.f32.mrb[0].mxu0
        %2487 = vmatprep.mubr.bf16.mxu0 0
        %2488 = vmatmul.mubr.bf16.gmra.mrb[0].mxu0 %v1475
        %v2489 = vpop.f32.mrb[0].mxu0
        %v2490 = vadd.f32 %v466, %v2489
        %v2491 = vpop.f32.mrb[0].mxu0
        %v2492 = vpop.f32.mrb[0].mxu0
        %v2493 = vadd.f32 %v466, %v2492
        %v2494 = vpop.f32.mrb[0].mxu0
        %2495 = vmatprep.mubr.bf16.mxu0 0
        %2496 = vmatmul.mubr.bf16.gmra.mrb[0].mxu0 %v1478
        %v2497 = vpop.f32.mrb[0].mxu0
        %v2498 = vadd.f32 %v466, %v2497
        %v2499 = vpop.f32.mrb[0].mxu0
        %v2500 = vpop.f32.mrb[0].mxu0
        %v2501 = vadd.f32 %v466, %v2500
        %v2502 = vpop.f32.mrb[0].mxu0
        %2503 = vmatprep.mubr.bf16.mxu0 0
        %2504 = vmatmul.mubr.bf16.gmra.mrb[0].mxu0 %v1481
        %v2505 = vpop.f32.mrb[0].mxu0
        %v2506 = vadd.f32 %v466, %v2505
        %v2507 = vpop.f32.mrb[0].mxu0
        %v2508 = vpop.f32.mrb[0].mxu0
        %v2509 = vadd.f32 %v466, %v2508
        %v2510 = vpop.f32.mrb[0].mxu0
        %2511 = vmatprep.mubr.bf16.mxu0 0
        %2512 = vmatmul.mubr.bf16.gmra.mrb[0].mxu0 %v1484
        %v2513 = vpop.f32.mrb[0].mxu0
        %v2514 = vadd.f32 %v466, %v2513
        %v2515 = vpop.f32.mrb[0].mxu0
        %v2516 = vpop.f32.mrb[0].mxu0
        %v2517 = vadd.f32 %v466, %v2516
        %v2518 = vpop.f32.mrb[0].mxu0
        %2519 = vmatprep.mubr.bf16.mxu0 0
        %2520 = vmatmul.mubr.bf16.gmra.mrb[0].mxu0 %v1487
        %v2521 = vpop.f32.mrb[0].mxu0
        %v2522 = vadd.f32 %v466, %v2521
        %v2523 = vpop.f32.mrb[0].mxu0
        %v2524 = vpop.f32.mrb[0].mxu0
        %v2525 = vadd.f32 %v466, %v2524
        %v2526 = vpop.f32.mrb[0].mxu0
        %2527 = vmatprep.mubr.bf16.mxu0 0
        %2528 = vmatmul.mubr.bf16.gmra.mrb[0].mxu0 %v1490
        %v2529 = vpop.f32.mrb[0].mxu0
        %v2530 = vadd.f32 %v466, %v2529
        %v2531 = vpop.f32.mrb[0].mxu0
        %v2532 = vpop.f32.mrb[0].mxu0
        %v2533 = vadd.f32 %v466, %v2532
        %v2534 = vpop.f32.mrb[0].mxu0
        %2535 = vmatprep.mubr.bf16.mxu0 0
        %2536 = vmatmul.mubr.bf16.gmra.mrb[0].mxu0 %v1493
        %v2537 = vpop.f32.mrb[0].mxu0
        %v2538 = vadd.f32 %v466, %v2537
        %v2539 = vpop.f32.mrb[0].mxu0
        %v2540 = vpop.f32.mrb[0].mxu0
        %v2541 = vadd.f32 %v466, %v2540
        %v2542 = vpop.f32.mrb[0].mxu0
        %2543 = vmatprep.mubr.bf16.mxu0 0
        %2544 = vmatmul.mubr.bf16.gmra.mrb[0].mxu0 %v1496
        %v2545 = vpop.f32.mrb[0].mxu0
        %v2546 = vadd.f32 %v466, %v2545
        %v2547 = vpop.f32.mrb[0].mxu0
        %v2548 = vpop.f32.mrb[0].mxu0
        %v2549 = vadd.f32 %v466, %v2548
        %v2550 = vpop.f32.mrb[0].mxu0
        %2551 = vmatprep.mubr.bf16.mxu0 0
        %2552 = vmatmul.mubr.bf16.gmra.mrb[0].mxu0 %v1499
        %v2553 = vpop.f32.mrb[0].mxu0
        %v2554 = vadd.f32 %v466, %v2553
        %v2555 = vpop.f32.mrb[0].mxu0
        %v2556 = vpop.f32.mrb[0].mxu0
        %v2557 = vadd.f32 %v466, %v2556
        %v2558 = vpop.f32.mrb[0].mxu0
        %2559 = vmatprep.mubr.bf16.mxu0 0
        %2560 = vmatmul.mubr.bf16.gmra.mrb[0].mxu0 %v1502
        %v2561 = vpop.f32.mrb[0].mxu0
        %v2562 = vadd.f32 %v466, %v2561
        %v2563 = vpop.f32.mrb[0].mxu0
        %v2564 = vpop.f32.mrb[0].mxu0
        %v2565 = vadd.f32 %v466, %v2564
        %v2566 = vpop.f32.mrb[0].mxu0
        %2567 = vdwg.mxu0
        %v2568 = vmax.f32 %v1546, 0.0
        %v2569 = vmax.f32 %v1549, 0.0
        %v2570 = vmax.f32 %v1554, 0.0
        %v2571 = vmax.f32 %v1557, 0.0
        %v2572 = vmax.f32 %v1562, 0.0
        %v2573 = vmax.f32 %v1565, 0.0
        %v2574 = vmax.f32 %v1570, 0.0
        %v2575 = vmax.f32 %v1573, 0.0
        %v2576 = vmax.f32 %v1578, 0.0
        %v2577 = vmax.f32 %v1581, 0.0
        %v2578 = vmax.f32 %v1586, 0.0
        %v2579 = vmax.f32 %v1589, 0.0
        %v2580 = vmax.f32 %v1594, 0.0
        %v2581 = vmax.f32 %v1597, 0.0
        %v2582 = vmax.f32 %v1602, 0.0
        %v2583 = vmax.f32 %v1605, 0.0
        %v2584 = vmax.f32 %v1610, 0.0
        %v2585 = vmax.f32 %v1613, 0.0
        %v2586 = vmax.f32 %v1618, 0.0
        %v2587 = vmax.f32 %v1621, 0.0
        %v2588 = vmax.f32 %v1626, 0.0
        %v2589 = vmax.f32 %v1629, 0.0
        %v2590 = vmax.f32 %v1634, 0.0
        %v2591 = vmax.f32 %v1637, 0.0
        %v2592 = vmax.f32 %v1642, 0.0
        %v2593 = vmax.f32 %v1645, 0.0
        %v2594 = vmax.f32 %v1650, 0.0
        %v2595 = vmax.f32 %v1653, 0.0
        %v2596 = vmax.f32 %v1658, 0.0
        %v2597 = vmax.f32 %v1661, 0.0
        %v2598 = vmax.f32 %v1666, 0.0
        %v2599 = vmax.f32 %v1669, 0.0
        %v2600 = vmax.f32 %v1674, 0.0
        %v2601 = vmax.f32 %v1677, 0.0
        %v2602 = vmax.f32 %v1682, 0.0
        %v2603 = vmax.f32 %v1685, 0.0
        %v2604 = vmax.f32 %v1690, 0.0
        %v2605 = vmax.f32 %v1693, 0.0
        %v2606 = vmax.f32 %v1698, 0.0
        %v2607 = vmax.f32 %v1701, 0.0
        %v2608 = vmax.f32 %v1706, 0.0
        %v2609 = vmax.f32 %v1709, 0.0
        %v2610 = vmax.f32 %v1714, 0.0
        %v2611 = vmax.f32 %v1717, 0.0
        %v2612 = vmax.f32 %v1722, 0.0
        %v2613 = vmax.f32 %v1725, 0.0
        %v2614 = vmax.f32 %v1730, 0.0
        %v2615 = vmax.f32 %v1733, 0.0
        %v2616 = vmax.f32 %v1738, 0.0
        %v2617 = vmax.f32 %v1741, 0.0
        %v2618 = vmax.f32 %v1746, 0.0
        %v2619 = vmax.f32 %v1749, 0.0
        %v2620 = vmax.f32 %v1754, 0.0
        %v2621 = vmax.f32 %v1757, 0.0
        %v2622 = vmax.f32 %v1762, 0.0
        %v2623 = vmax.f32 %v1765, 0.0
        %v2624 = vmax.f32 %v1770, 0.0
        %v2625 = vmax.f32 %v1773, 0.0
        %v2626 = vmax.f32 %v1778, 0.0
        %v2627 = vmax.f32 %v1781, 0.0
        %v2628 = vmax.f32 %v1786, 0.0
        %v2629 = vmax.f32 %v1789, 0.0
        %v2630 = vmax.f32 %v1794, 0.0
        %v2631 = vmax.f32 %v1797, 0.0
        %v2632 = vmax.f32 %v1802, 0.0
        %v2633 = vmax.f32 %v1805, 0.0
        %v2634 = vmax.f32 %v1810, 0.0
        %v2635 = vmax.f32 %v1813, 0.0
        %v2636 = vmax.f32 %v1818, 0.0
        %v2637 = vmax.f32 %v1821, 0.0
        %v2638 = vmax.f32 %v1826, 0.0
        %v2639 = vmax.f32 %v1829, 0.0
        %v2640 = vmax.f32 %v1834, 0.0
        %v2641 = vmax.f32 %v1837, 0.0
        %v2642 = vmax.f32 %v1842, 0.0
        %v2643 = vmax.f32 %v1845, 0.0
        %v2644 = vmax.f32 %v1850, 0.0
        %v2645 = vmax.f32 %v1853, 0.0
        %v2646 = vmax.f32 %v1858, 0.0
        %v2647 = vmax.f32 %v1861, 0.0
        %v2648 = vmax.f32 %v1866, 0.0
        %v2649 = vmax.f32 %v1869, 0.0
        %v2650 = vmax.f32 %v1874, 0.0
        %v2651 = vmax.f32 %v1877, 0.0
        %v2652 = vmax.f32 %v1882, 0.0
        %v2653 = vmax.f32 %v1885, 0.0
        %v2654 = vmax.f32 %v1890, 0.0
        %v2655 = vmax.f32 %v1893, 0.0
        %v2656 = vmax.f32 %v1898, 0.0
        %v2657 = vmax.f32 %v1901, 0.0
        %v2658 = vmax.f32 %v1906, 0.0
        %v2659 = vmax.f32 %v1909, 0.0
        %v2660 = vmax.f32 %v1914, 0.0
        %v2661 = vmax.f32 %v1917, 0.0
        %v2662 = vmax.f32 %v1922, 0.0
        %v2663 = vmax.f32 %v1925, 0.0
        %v2664 = vmax.f32 %v1930, 0.0
        %v2665 = vmax.f32 %v1933, 0.0
        %v2666 = vmax.f32 %v1938, 0.0
        %v2667 = vmax.f32 %v1941, 0.0
        %v2668 = vmax.f32 %v1946, 0.0
        %v2669 = vmax.f32 %v1949, 0.0
        %v2670 = vmax.f32 %v1954, 0.0
        %v2671 = vmax.f32 %v1957, 0.0
        %v2672 = vmax.f32 %v1962, 0.0
        %v2673 = vmax.f32 %v1965, 0.0
        %v2674 = vmax.f32 %v1970, 0.0
        %v2675 = vmax.f32 %v1973, 0.0
        %v2676 = vmax.f32 %v1978, 0.0
        %v2677 = vmax.f32 %v1981, 0.0
        %v2678 = vmax.f32 %v1986, 0.0
        %v2679 = vmax.f32 %v1989, 0.0
        %v2680 = vmax.f32 %v1994, 0.0
        %v2681 = vmax.f32 %v1997, 0.0
        %v2682 = vmax.f32 %v2002, 0.0
        %v2683 = vmax.f32 %v2005, 0.0
        %v2684 = vmax.f32 %v2010, 0.0
        %v2685 = vmax.f32 %v2013, 0.0
        %v2686 = vmax.f32 %v2018, 0.0
        %v2687 = vmax.f32 %v2021, 0.0
        %v2688 = vmax.f32 %v2026, 0.0
        %v2689 = vmax.f32 %v2029, 0.0
        %v2690 = vmax.f32 %v2034, 0.0
        %v2691 = vmax.f32 %v2037, 0.0
        %v2692 = vmax.f32 %v2042, 0.0
        %v2693 = vmax.f32 %v2045, 0.0
        %v2694 = vmax.f32 %v2050, 0.0
        %v2695 = vmax.f32 %v2053, 0.0
        %v2696 = vmax.f32 %v2058, 0.0
        %v2697 = vmax.f32 %v2061, 0.0
        %v2698 = vmax.f32 %v2066, 0.0
        %v2699 = vmax.f32 %v2069, 0.0
        %v2700 = vmax.f32 %v2074, 0.0
        %v2701 = vmax.f32 %v2077, 0.0
        %v2702 = vmax.f32 %v2082, 0.0
        %v2703 = vmax.f32 %v2085, 0.0
        %v2704 = vmax.f32 %v2090, 0.0
        %v2705 = vmax.f32 %v2093, 0.0
        %v2706 = vmax.f32 %v2098, 0.0
        %v2707 = vmax.f32 %v2101, 0.0
        %v2708 = vmax.f32 %v2106, 0.0
        %v2709 = vmax.f32 %v2109, 0.0
        %v2710 = vmax.f32 %v2114, 0.0
        %v2711 = vmax.f32 %v2117, 0.0
        %v2712 = vmax.f32 %v2122, 0.0
        %v2713 = vmax.f32 %v2125, 0.0
        %v2714 = vmax.f32 %v2130, 0.0
        %v2715 = vmax.f32 %v2133, 0.0
        %v2716 = vmax.f32 %v2138, 0.0
        %v2717 = vmax.f32 %v2141, 0.0
        %v2718 = vmax.f32 %v2146, 0.0
        %v2719 = vmax.f32 %v2149, 0.0
        %v2720 = vmax.f32 %v2154, 0.0
        %v2721 = vmax.f32 %v2157, 0.0
        %v2722 = vmax.f32 %v2162, 0.0
        %v2723 = vmax.f32 %v2165, 0.0
        %v2724 = vmax.f32 %v2170, 0.0
        %v2725 = vmax.f32 %v2173, 0.0
        %v2726 = vmax.f32 %v2178, 0.0
        %v2727 = vmax.f32 %v2181, 0.0
        %v2728 = vmax.f32 %v2186, 0.0
        %v2729 = vmax.f32 %v2189, 0.0
        %v2730 = vmax.f32 %v2194, 0.0
        %v2731 = vmax.f32 %v2197, 0.0
        %v2732 = vmax.f32 %v2202, 0.0
        %v2733 = vmax.f32 %v2205, 0.0
        %v2734 = vmax.f32 %v2210, 0.0
        %v2735 = vmax.f32 %v2213, 0.0
        %v2736 = vmax.f32 %v2218, 0.0
        %v2737 = vmax.f32 %v2221, 0.0
        %v2738 = vmax.f32 %v2226, 0.0
        %v2739 = vmax.f32 %v2229, 0.0
        %v2740 = vmax.f32 %v2234, 0.0
        %v2741 = vmax.f32 %v2237, 0.0
        %v2742 = vmax.f32 %v2242, 0.0
        %v2743 = vmax.f32 %v2245, 0.0
        %v2744 = vmax.f32 %v2250, 0.0
        %v2745 = vmax.f32 %v2253, 0.0
        %v2746 = vmax.f32 %v2258, 0.0
        %v2747 = vmax.f32 %v2261, 0.0
        %v2748 = vmax.f32 %v2266, 0.0
        %v2749 = vmax.f32 %v2269, 0.0
        %v2750 = vmax.f32 %v2274, 0.0
        %v2751 = vmax.f32 %v2277, 0.0
        %v2752 = vmax.f32 %v2282, 0.0
        %v2753 = vmax.f32 %v2285, 0.0
        %v2754 = vmax.f32 %v2290, 0.0
        %v2755 = vmax.f32 %v2293, 0.0
        %v2756 = vmax.f32 %v2298, 0.0
        %v2757 = vmax.f32 %v2301, 0.0
        %v2758 = vmax.f32 %v2306, 0.0
        %v2759 = vmax.f32 %v2309, 0.0
        %v2760 = vmax.f32 %v2314, 0.0
        %v2761 = vmax.f32 %v2317, 0.0
        %v2762 = vmax.f32 %v2322, 0.0
        %v2763 = vmax.f32 %v2325, 0.0
        %v2764 = vmax.f32 %v2330, 0.0
        %v2765 = vmax.f32 %v2333, 0.0
        %v2766 = vmax.f32 %v2338, 0.0
        %v2767 = vmax.f32 %v2341, 0.0
        %v2768 = vmax.f32 %v2346, 0.0
        %v2769 = vmax.f32 %v2349, 0.0
        %v2770 = vmax.f32 %v2354, 0.0
        %v2771 = vmax.f32 %v2357, 0.0
        %v2772 = vmax.f32 %v2362, 0.0
        %v2773 = vmax.f32 %v2365, 0.0
        %v2774 = vmax.f32 %v2370, 0.0
        %v2775 = vmax.f32 %v2373, 0.0
        %v2776 = vmax.f32 %v2378, 0.0
        %v2777 = vmax.f32 %v2381, 0.0
        %v2778 = vmax.f32 %v2386, 0.0
        %v2779 = vmax.f32 %v2389, 0.0
        %v2780 = vmax.f32 %v2394, 0.0
        %v2781 = vmax.f32 %v2397, 0.0
        %v2782 = vmax.f32 %v2402, 0.0
        %v2783 = vmax.f32 %v2405, 0.0
        %v2784 = vmax.f32 %v2410, 0.0
        %v2785 = vmax.f32 %v2413, 0.0
        %v2786 = vmax.f32 %v2418, 0.0
        %v2787 = vmax.f32 %v2421, 0.0
        %v2788 = vmax.f32 %v2426, 0.0
        %v2789 = vmax.f32 %v2429, 0.0
        %v2790 = vmax.f32 %v2434, 0.0
        %v2791 = vmax.f32 %v2437, 0.0
        %v2792 = vmax.f32 %v2442, 0.0
        %v2793 = vmax.f32 %v2445, 0.0
        %v2794 = vmax.f32 %v2450, 0.0
        %v2795 = vmax.f32 %v2453, 0.0
        %v2796 = vmax.f32 %v2458, 0.0
        %v2797 = vmax.f32 %v2461, 0.0
        %v2798 = vmax.f32 %v2466, 0.0
        %v2799 = vmax.f32 %v2469, 0.0
        %v2800 = vmax.f32 %v2474, 0.0
        %v2801 = vmax.f32 %v2477, 0.0
        %v2802 = vmax.f32 %v2482, 0.0
        %v2803 = vmax.f32 %v2485, 0.0
        %v2804 = vmax.f32 %v2490, 0.0
        %v2805 = vmax.f32 %v2493, 0.0
        %v2806 = vmax.f32 %v2498, 0.0
        %v2807 = vmax.f32 %v2501, 0.0
        %v2808 = vmax.f32 %v2506, 0.0
        %v2809 = vmax.f32 %v2509, 0.0
        %v2810 = vmax.f32 %v2514, 0.0
        %v2811 = vmax.f32 %v2517, 0.0
        %v2812 = vmax.f32 %v2522, 0.0
        %v2813 = vmax.f32 %v2525, 0.0
        %v2814 = vmax.f32 %v2530, 0.0
        %v2815 = vmax.f32 %v2533, 0.0
        %v2816 = vmax.f32 %v2538, 0.0
        %v2817 = vmax.f32 %v2541, 0.0
        %v2818 = vmax.f32 %v2546, 0.0
        %v2819 = vmax.f32 %v2549, 0.0
        %v2820 = vmax.f32 %v2554, 0.0
        %v2821 = vmax.f32 %v2557, 0.0
        %v2822 = vmax.f32 %v2562, 0.0
        %v2823 = vmax.f32 %v2565, 0.0
        %2824 = vst [vmem:[%s192] sm:$0xff] %v2568
        %2825 = vst [vmem:[%s192 + $0x8] sm:$0xff] %v2569
        %2826 = vst [vmem:[%s192 + $0x10] sm:$0xff] %v2570
        %2827 = vst [vmem:[%s192 + $0x18] sm:$0xff] %v2571
        %2828 = vst [vmem:[%s192 + $0x20] sm:$0xff] %v2572
        %2829 = vst [vmem:[%s192 + $0x28] sm:$0xff] %v2573
        %2830 = vst [vmem:[%s192 + $0x30] sm:$0xff] %v2574
        %2831 = vst [vmem:[%s192 + $0x38] sm:$0xff] %v2575
        %2832 = vst [vmem:[%s192 + $0x40] sm:$0xff] %v2576
        %2833 = vst [vmem:[%s192 + $0x48] sm:$0xff] %v2577
        %2834 = vst [vmem:[%s192 + $0x50] sm:$0xff] %v2578
        %2835 = vst [vmem:[%s192 + $0x58] sm:$0xff] %v2579
        %2836 = vst [vmem:[%s192 + $0x60] sm:$0xff] %v2580
        %2837 = vst [vmem:[%s192 + $0x68] sm:$0xff] %v2581
        %2838 = vst [vmem:[%s192 + $0x70] sm:$0xff] %v2582
        %2839 = vst [vmem:[%s192 + $0x78] sm:$0xff] %v2583
        %2840 = vst [vmem:[%s192 + $0x80] sm:$0xff] %v2584
        %2841 = vst [vmem:[%s192 + $0x88] sm:$0xff] %v2585
        %2842 = vst [vmem:[%s192 + $0x90] sm:$0xff] %v2586
        %2843 = vst [vmem:[%s192 + $0x98] sm:$0xff] %v2587
        %2844 = vst [vmem:[%s192 + $0xa0] sm:$0xff] %v2588
        %2845 = vst [vmem:[%s192 + $0xa8] sm:$0xff] %v2589
        %2846 = vst [vmem:[%s192 + $0xb0] sm:$0xff] %v2590
        %2847 = vst [vmem:[%s192 + $0xb8] sm:$0xff] %v2591
        %2848 = vst [vmem:[%s192 + $0xc0] sm:$0xff] %v2592
        %2849 = vst [vmem:[%s192 + $0xc8] sm:$0xff] %v2593
        %2850 = vst [vmem:[%s192 + $0xd0] sm:$0xff] %v2594
        %2851 = vst [vmem:[%s192 + $0xd8] sm:$0xff] %v2595
        %2852 = vst [vmem:[%s192 + $0xe0] sm:$0xff] %v2596
        %2853 = vst [vmem:[%s192 + $0xe8] sm:$0xff] %v2597
        %2854 = vst [vmem:[%s192 + $0xf0] sm:$0xff] %v2598
        %2855 = vst [vmem:[%s192 + $0xf8] sm:$0xff] %v2599
        %2856 = vst [vmem:[%s192 + $0x100] sm:$0xff] %v2600
        %2857 = vst [vmem:[%s192 + $0x108] sm:$0xff] %v2601
        %2858 = vst [vmem:[%s192 + $0x110] sm:$0xff] %v2602
        %2859 = vst [vmem:[%s192 + $0x118] sm:$0xff] %v2603
        %2860 = vst [vmem:[%s192 + $0x120] sm:$0xff] %v2604
        %2861 = vst [vmem:[%s192 + $0x128] sm:$0xff] %v2605
        %2862 = vst [vmem:[%s192 + $0x130] sm:$0xff] %v2606
        %2863 = vst [vmem:[%s192 + $0x138] sm:$0xff] %v2607
        %2864 = vst [vmem:[%s192 + $0x140] sm:$0xff] %v2608
        %2865 = vst [vmem:[%s192 + $0x148] sm:$0xff] %v2609
        %2866 = vst [vmem:[%s192 + $0x150] sm:$0xff] %v2610
        %2867 = vst [vmem:[%s192 + $0x158] sm:$0xff] %v2611
        %2868 = vst [vmem:[%s192 + $0x160] sm:$0xff] %v2612
        %2869 = vst [vmem:[%s192 + $0x168] sm:$0xff] %v2613
        %2870 = vst [vmem:[%s192 + $0x170] sm:$0xff] %v2614
        %2871 = vst [vmem:[%s192 + $0x178] sm:$0xff] %v2615
        %2872 = vst [vmem:[%s192 + $0x180] sm:$0xff] %v2616
        %2873 = vst [vmem:[%s192 + $0x188] sm:$0xff] %v2617
        %2874 = vst [vmem:[%s192 + $0x190] sm:$0xff] %v2618
        %2875 = vst [vmem:[%s192 + $0x198] sm:$0xff] %v2619
        %2876 = vst [vmem:[%s192 + $0x1a0] sm:$0xff] %v2620
        %2877 = vst [vmem:[%s192 + $0x1a8] sm:$0xff] %v2621
        %2878 = vst [vmem:[%s192 + $0x1b0] sm:$0xff] %v2622
        %2879 = vst [vmem:[%s192 + $0x1b8] sm:$0xff] %v2623
        %2880 = vst [vmem:[%s192 + $0x1c0] sm:$0xff] %v2624
        %2881 = vst [vmem:[%s192 + $0x1c8] sm:$0xff] %v2625
        %2882 = vst [vmem:[%s192 + $0x1d0] sm:$0xff] %v2626
        %2883 = vst [vmem:[%s192 + $0x1d8] sm:$0xff] %v2627
        %2884 = vst [vmem:[%s192 + $0x1e0] sm:$0xff] %v2628
        %2885 = vst [vmem:[%s192 + $0x1e8] sm:$0xff] %v2629
        %2886 = vst [vmem:[%s192 + $0x1f0] sm:$0xff] %v2630
        %2887 = vst [vmem:[%s192 + $0x1f8] sm:$0xff] %v2631
        %2888 = vst [vmem:[%s192 + $0x200] sm:$0xff] %v2632
        %2889 = vst [vmem:[%s192 + $0x208] sm:$0xff] %v2633
        %2890 = vst [vmem:[%s192 + $0x210] sm:$0xff] %v2634
        %2891 = vst [vmem:[%s192 + $0x218] sm:$0xff] %v2635
        %2892 = vst [vmem:[%s192 + $0x220] sm:$0xff] %v2636
        %2893 = vst [vmem:[%s192 + $0x228] sm:$0xff] %v2637
        %2894 = vst [vmem:[%s192 + $0x230] sm:$0xff] %v2638
        %2895 = vst [vmem:[%s192 + $0x238] sm:$0xff] %v2639
        %2896 = vst [vmem:[%s192 + $0x240] sm:$0xff] %v2640
        %2897 = vst [vmem:[%s192 + $0x248] sm:$0xff] %v2641
        %2898 = vst [vmem:[%s192 + $0x250] sm:$0xff] %v2642
        %2899 = vst [vmem:[%s192 + $0x258] sm:$0xff] %v2643
        %2900 = vst [vmem:[%s192 + $0x260] sm:$0xff] %v2644
        %2901 = vst [vmem:[%s192 + $0x268] sm:$0xff] %v2645
        %2902 = vst [vmem:[%s192 + $0x270] sm:$0xff] %v2646
        %2903 = vst [vmem:[%s192 + $0x278] sm:$0xff] %v2647
        %2904 = vst [vmem:[%s192 + $0x280] sm:$0xff] %v2648
        %2905 = vst [vmem:[%s192 + $0x288] sm:$0xff] %v2649
        %2906 = vst [vmem:[%s192 + $0x290] sm:$0xff] %v2650
        %2907 = vst [vmem:[%s192 + $0x298] sm:$0xff] %v2651
        %2908 = vst [vmem:[%s192 + $0x2a0] sm:$0xff] %v2652
        %2909 = vst [vmem:[%s192 + $0x2a8] sm:$0xff] %v2653
        %2910 = vst [vmem:[%s192 + $0x2b0] sm:$0xff] %v2654
        %2911 = vst [vmem:[%s192 + $0x2b8] sm:$0xff] %v2655
        %2912 = vst [vmem:[%s192 + $0x2c0] sm:$0xff] %v2656
        %2913 = vst [vmem:[%s192 + $0x2c8] sm:$0xff] %v2657
        %2914 = vst [vmem:[%s192 + $0x2d0] sm:$0xff] %v2658
        %2915 = vst [vmem:[%s192 + $0x2d8] sm:$0xff] %v2659
        %2916 = vst [vmem:[%s192 + $0x2e0] sm:$0xff] %v2660
        %2917 = vst [vmem:[%s192 + $0x2e8] sm:$0xff] %v2661
        %2918 = vst [vmem:[%s192 + $0x2f0] sm:$0xff] %v2662
        %2919 = vst [vmem:[%s192 + $0x2f8] sm:$0xff] %v2663
        %2920 = vst [vmem:[%s192 + $0x300] sm:$0xff] %v2664
        %2921 = vst [vmem:[%s192 + $0x308] sm:$0xff] %v2665
        %2922 = vst [vmem:[%s192 + $0x310] sm:$0xff] %v2666
        %2923 = vst [vmem:[%s192 + $0x318] sm:$0xff] %v2667
        %2924 = vst [vmem:[%s192 + $0x320] sm:$0xff] %v2668
        %2925 = vst [vmem:[%s192 + $0x328] sm:$0xff] %v2669
        %2926 = vst [vmem:[%s192 + $0x330] sm:$0xff] %v2670
        %2927 = vst [vmem:[%s192 + $0x338] sm:$0xff] %v2671
        %2928 = vst [vmem:[%s192 + $0x340] sm:$0xff] %v2672
        %2929 = vst [vmem:[%s192 + $0x348] sm:$0xff] %v2673
        %2930 = vst [vmem:[%s192 + $0x350] sm:$0xff] %v2674
        %2931 = vst [vmem:[%s192 + $0x358] sm:$0xff] %v2675
        %2932 = vst [vmem:[%s192 + $0x360] sm:$0xff] %v2676
        %2933 = vst [vmem:[%s192 + $0x368] sm:$0xff] %v2677
        %2934 = vst [vmem:[%s192 + $0x370] sm:$0xff] %v2678
        %2935 = vst [vmem:[%s192 + $0x378] sm:$0xff] %v2679
        %2936 = vst [vmem:[%s192 + $0x380] sm:$0xff] %v2680
        %2937 = vst [vmem:[%s192 + $0x388] sm:$0xff] %v2681
        %2938 = vst [vmem:[%s192 + $0x390] sm:$0xff] %v2682
        %2939 = vst [vmem:[%s192 + $0x398] sm:$0xff] %v2683
        %2940 = vst [vmem:[%s192 + $0x3a0] sm:$0xff] %v2684
        %2941 = vst [vmem:[%s192 + $0x3a8] sm:$0xff] %v2685
        %2942 = vst [vmem:[%s192 + $0x3b0] sm:$0xff] %v2686
        %2943 = vst [vmem:[%s192 + $0x3b8] sm:$0xff] %v2687
        %2944 = vst [vmem:[%s192 + $0x3c0] sm:$0xff] %v2688
        %2945 = vst [vmem:[%s192 + $0x3c8] sm:$0xff] %v2689
        %2946 = vst [vmem:[%s192 + $0x3d0] sm:$0xff] %v2690
        %2947 = vst [vmem:[%s192 + $0x3d8] sm:$0xff] %v2691
        %2948 = vst [vmem:[%s192 + $0x3e0] sm:$0xff] %v2692
        %2949 = vst [vmem:[%s192 + $0x3e8] sm:$0xff] %v2693
        %2950 = vst [vmem:[%s192 + $0x3f0] sm:$0xff] %v2694
        %2951 = vst [vmem:[%s192 + $0x3f8] sm:$0xff] %v2695
        %2952 = vst [vmem:[%s192 + $0x400] sm:$0xff] %v2696
        %2953 = vst [vmem:[%s192 + $0x408] sm:$0xff] %v2697
        %2954 = vst [vmem:[%s192 + $0x410] sm:$0xff] %v2698
        %2955 = vst [vmem:[%s192 + $0x418] sm:$0xff] %v2699
        %2956 = vst [vmem:[%s192 + $0x420] sm:$0xff] %v2700
        %2957 = vst [vmem:[%s192 + $0x428] sm:$0xff] %v2701
        %2958 = vst [vmem:[%s192 + $0x430] sm:$0xff] %v2702
        %2959 = vst [vmem:[%s192 + $0x438] sm:$0xff] %v2703
        %2960 = vst [vmem:[%s192 + $0x440] sm:$0xff] %v2704
        %2961 = vst [vmem:[%s192 + $0x448] sm:$0xff] %v2705
        %2962 = vst [vmem:[%s192 + $0x450] sm:$0xff] %v2706
        %2963 = vst [vmem:[%s192 + $0x458] sm:$0xff] %v2707
        %2964 = vst [vmem:[%s192 + $0x460] sm:$0xff] %v2708
        %2965 = vst [vmem:[%s192 + $0x468] sm:$0xff] %v2709
        %2966 = vst [vmem:[%s192 + $0x470] sm:$0xff] %v2710
        %2967 = vst [vmem:[%s192 + $0x478] sm:$0xff] %v2711
        %2968 = vst [vmem:[%s192 + $0x480] sm:$0xff] %v2712
        %2969 = vst [vmem:[%s192 + $0x488] sm:$0xff] %v2713
        %2970 = vst [vmem:[%s192 + $0x490] sm:$0xff] %v2714
        %2971 = vst [vmem:[%s192 + $0x498] sm:$0xff] %v2715
        %2972 = vst [vmem:[%s192 + $0x4a0] sm:$0xff] %v2716
        %2973 = vst [vmem:[%s192 + $0x4a8] sm:$0xff] %v2717
        %2974 = vst [vmem:[%s192 + $0x4b0] sm:$0xff] %v2718
        %2975 = vst [vmem:[%s192 + $0x4b8] sm:$0xff] %v2719
        %2976 = vst [vmem:[%s192 + $0x4c0] sm:$0xff] %v2720
        %2977 = vst [vmem:[%s192 + $0x4c8] sm:$0xff] %v2721
        %2978 = vst [vmem:[%s192 + $0x4d0] sm:$0xff] %v2722
        %2979 = vst [vmem:[%s192 + $0x4d8] sm:$0xff] %v2723
        %2980 = vst [vmem:[%s192 + $0x4e0] sm:$0xff] %v2724
        %2981 = vst [vmem:[%s192 + $0x4e8] sm:$0xff] %v2725
        %2982 = vst [vmem:[%s192 + $0x4f0] sm:$0xff] %v2726
        %2983 = vst [vmem:[%s192 + $0x4f8] sm:$0xff] %v2727
        %2984 = vst [vmem:[%s192 + $0x500] sm:$0xff] %v2728
        %2985 = vst [vmem:[%s192 + $0x508] sm:$0xff] %v2729
        %2986 = vst [vmem:[%s192 + $0x510] sm:$0xff] %v2730
        %2987 = vst [vmem:[%s192 + $0x518] sm:$0xff] %v2731
        %2988 = vst [vmem:[%s192 + $0x520] sm:$0xff] %v2732
        %2989 = vst [vmem:[%s192 + $0x528] sm:$0xff] %v2733
        %2990 = vst [vmem:[%s192 + $0x530] sm:$0xff] %v2734
        %2991 = vst [vmem:[%s192 + $0x538] sm:$0xff] %v2735
        %2992 = vst [vmem:[%s192 + $0x540] sm:$0xff] %v2736
        %2993 = vst [vmem:[%s192 + $0x548] sm:$0xff] %v2737
        %2994 = vst [vmem:[%s192 + $0x550] sm:$0xff] %v2738
        %2995 = vst [vmem:[%s192 + $0x558] sm:$0xff] %v2739
        %2996 = vst [vmem:[%s192 + $0x560] sm:$0xff] %v2740
        %2997 = vst [vmem:[%s192 + $0x568] sm:$0xff] %v2741
        %2998 = vst [vmem:[%s192 + $0x570] sm:$0xff] %v2742
        %2999 = vst [vmem:[%s192 + $0x578] sm:$0xff] %v2743
        %3000 = vst [vmem:[%s192 + $0x580] sm:$0xff] %v2744
        %3001 = vst [vmem:[%s192 + $0x588] sm:$0xff] %v2745
        %3002 = vst [vmem:[%s192 + $0x590] sm:$0xff] %v2746
        %3003 = vst [vmem:[%s192 + $0x598] sm:$0xff] %v2747
        %3004 = vst [vmem:[%s192 + $0x5a0] sm:$0xff] %v2748
        %3005 = vst [vmem:[%s192 + $0x5a8] sm:$0xff] %v2749
        %3006 = vst [vmem:[%s192 + $0x5b0] sm:$0xff] %v2750
        %3007 = vst [vmem:[%s192 + $0x5b8] sm:$0xff] %v2751
        %3008 = vst [vmem:[%s192 + $0x5c0] sm:$0xff] %v2752
        %3009 = vst [vmem:[%s192 + $0x5c8] sm:$0xff] %v2753
        %3010 = vst [vmem:[%s192 + $0x5d0] sm:$0xff] %v2754
        %3011 = vst [vmem:[%s192 + $0x5d8] sm:$0xff] %v2755
        %3012 = vst [vmem:[%s192 + $0x5e0] sm:$0xff] %v2756
        %3013 = vst [vmem:[%s192 + $0x5e8] sm:$0xff] %v2757
        %3014 = vst [vmem:[%s192 + $0x5f0] sm:$0xff] %v2758
        %3015 = vst [vmem:[%s192 + $0x5f8] sm:$0xff] %v2759
        %3016 = vst [vmem:[%s192 + $0x600] sm:$0xff] %v2760
        %3017 = vst [vmem:[%s192 + $0x608] sm:$0xff] %v2761
        %3018 = vst [vmem:[%s192 + $0x610] sm:$0xff] %v2762
        %3019 = vst [vmem:[%s192 + $0x618] sm:$0xff] %v2763
        %3020 = vst [vmem:[%s192 + $0x620] sm:$0xff] %v2764
        %3021 = vst [vmem:[%s192 + $0x628] sm:$0xff] %v2765
        %3022 = vst [vmem:[%s192 + $0x630] sm:$0xff] %v2766
        %3023 = vst [vmem:[%s192 + $0x638] sm:$0xff] %v2767
        %3024 = vst [vmem:[%s192 + $0x640] sm:$0xff] %v2768
        %3025 = vst [vmem:[%s192 + $0x648] sm:$0xff] %v2769
        %3026 = vst [vmem:[%s192 + $0x650] sm:$0xff] %v2770
        %3027 = vst [vmem:[%s192 + $0x658] sm:$0xff] %v2771
        %3028 = vst [vmem:[%s192 + $0x660] sm:$0xff] %v2772
        %3029 = vst [vmem:[%s192 + $0x668] sm:$0xff] %v2773
        %3030 = vst [vmem:[%s192 + $0x670] sm:$0xff] %v2774
        %3031 = vst [vmem:[%s192 + $0x678] sm:$0xff] %v2775
        %3032 = vst [vmem:[%s192 + $0x680] sm:$0xff] %v2776
        %3033 = vst [vmem:[%s192 + $0x688] sm:$0xff] %v2777
        %3034 = vst [vmem:[%s192 + $0x690] sm:$0xff] %v2778
        %3035 = vst [vmem:[%s192 + $0x698] sm:$0xff] %v2779
        %3036 = vst [vmem:[%s192 + $0x6a0] sm:$0xff] %v2780
        %3037 = vst [vmem:[%s192 + $0x6a8] sm:$0xff] %v2781
        %3038 = vst [vmem:[%s192 + $0x6b0] sm:$0xff] %v2782
        %3039 = vst [vmem:[%s192 + $0x6b8] sm:$0xff] %v2783
        %3040 = vst [vmem:[%s192 + $0x6c0] sm:$0xff] %v2784
        %3041 = vst [vmem:[%s192 + $0x6c8] sm:$0xff] %v2785
        %3042 = vst [vmem:[%s192 + $0x6d0] sm:$0xff] %v2786
        %3043 = vst [vmem:[%s192 + $0x6d8] sm:$0xff] %v2787
        %3044 = vst [vmem:[%s192 + $0x6e0] sm:$0xff] %v2788
        %3045 = vst [vmem:[%s192 + $0x6e8] sm:$0xff] %v2789
        %3046 = vst [vmem:[%s192 + $0x6f0] sm:$0xff] %v2790
        %3047 = vst [vmem:[%s192 + $0x6f8] sm:$0xff] %v2791
        %3048 = vst [vmem:[%s192 + $0x700] sm:$0xff] %v2792
        %3049 = vst [vmem:[%s192 + $0x708] sm:$0xff] %v2793
        %3050 = vst [vmem:[%s192 + $0x710] sm:$0xff] %v2794
        %3051 = vst [vmem:[%s192 + $0x718] sm:$0xff] %v2795
        %3052 = vst [vmem:[%s192 + $0x720] sm:$0xff] %v2796
        %3053 = vst [vmem:[%s192 + $0x728] sm:$0xff] %v2797
        %3054 = vst [vmem:[%s192 + $0x730] sm:$0xff] %v2798
        %3055 = vst [vmem:[%s192 + $0x738] sm:$0xff] %v2799
        %3056 = vst [vmem:[%s192 + $0x740] sm:$0xff] %v2800
        %3057 = vst [vmem:[%s192 + $0x748] sm:$0xff] %v2801
        %3058 = vst [vmem:[%s192 + $0x750] sm:$0xff] %v2802
        %3059 = vst [vmem:[%s192 + $0x758] sm:$0xff] %v2803
        %3060 = vst [vmem:[%s192 + $0x760] sm:$0xff] %v2804
        %3061 = vst [vmem:[%s192 + $0x768] sm:$0xff] %v2805
        %3062 = vst [vmem:[%s192 + $0x770] sm:$0xff] %v2806
        %3063 = vst [vmem:[%s192 + $0x778] sm:$0xff] %v2807
        %3064 = vst [vmem:[%s192 + $0x780] sm:$0xff] %v2808
        %3065 = vst [vmem:[%s192 + $0x788] sm:$0xff] %v2809
        %3066 = vst [vmem:[%s192 + $0x790] sm:$0xff] %v2810
        %3067 = vst [vmem:[%s192 + $0x798] sm:$0xff] %v2811
        %3068 = vst [vmem:[%s192 + $0x7a0] sm:$0xff] %v2812
        %3069 = vst [vmem:[%s192 + $0x7a8] sm:$0xff] %v2813
        %3070 = vst [vmem:[%s192 + $0x7b0] sm:$0xff] %v2814
        %3071 = vst [vmem:[%s192 + $0x7b8] sm:$0xff] %v2815
        %3072 = vst [vmem:[%s192 + $0x7c0] sm:$0xff] %v2816
        %3073 = vst [vmem:[%s192 + $0x7c8] sm:$0xff] %v2817
        %3074 = vst [vmem:[%s192 + $0x7d0] sm:$0xff] %v2818
        %3075 = vst [vmem:[%s192 + $0x7d8] sm:$0xff] %v2819
        %3076 = vst [vmem:[%s192 + $0x7e0] sm:$0xff] %v2820
        %3077 = vst [vmem:[%s192 + $0x7e8] sm:$0xff] %v2821
        %3078 = vst [vmem:[%s192 + $0x7f0] sm:$0xff] %v2822
        %3079 = vst [vmem:[%s192 + $0x7f8] sm:$0xff] %v2823
        %s3080 = sand.u32 %s95, 1
        %s3081 = scalar_lea.sflag [#allocation4], %s3080
        %s3082 = sand.u32 %s95, 1
        %s3083 = smul.addr %s3082, 2048
        %s3084 = scalar_lea.vmem [#allocation7], %s3083
        // Predicated region
        $region41: #{tpu_custom_call.1} parent=31 // pred_check
          %p3085 = pneg %p105
        $region42: #{tpu_custom_call.1} parent=31 // pred_check_branch
          %3087 = sbr.rel (%p3085) target = $region44
        $region43: #{tpu_custom_call.1} parent=31 // pred_region
          %s3088 = smul.u32 256, %s19
          %s3090 = ssub.s32 32768, 32768
          %3091 = vsyncadd %s3081, %s3090
          %s3092 = smul.addr %s3088, 128
          %s3093 = scalar_lea.hbm %s3, %s3092
          %s3094 = sshll.u32 %s3084, 4
          %s3095 = int_to_ptr.vmem [resolvable:$true] %s3094
          %3100 = dma.vmem_to_hbm [thread:$0]  %s3095, 32768, %s3093, %s3081, 128, 128, 8
        $region44: #{tpu_custom_call.1} parent=31 // pred_fallthru
          _
      $region32: #{tpu_custom_call.1} parent=5 // pred_fallthru
        _
      %p3101 = scmp.le.s32.totalorder 2, %s14
      // Predicated region
      $region45: #{tpu_custom_call.1} parent=5 // pred_check
        %p3102 = pneg %p3101
      $region46: #{tpu_custom_call.1} parent=5 // pred_check_branch
        %3104 = sbr.rel (%p3102) target = $region48
      $region47: #{tpu_custom_call.1} parent=5 // pred_region
        %s3105 = ssub.s32 %s14, 2
        // Predicated region
        $region49: #{tpu_custom_call.1} parent=47 // pred_check
          %p3106 = pneg %p111
        $region50: #{tpu_custom_call.1} parent=47 // pred_check_branch
          %3108 = sbr.rel (%p3106) target = $region52
        $region51: #{tpu_custom_call.1} parent=47 // pred_region
          %s3109 = sand.u32 %s96, 1
          %s3110 = scalar_lea.sflag [#allocation4], %s3109
          %s3111 = sand.u32 %s96, 1
          %s3112 = smul.addr %s3111, 2048
          %s3113 = scalar_lea.vmem [#allocation7], %s3112
          %3114 = dma.done %s3110, 32768
        $region52: #{tpu_custom_call.1} parent=47 // pred_fallthru
          _
      $region48: #{tpu_custom_call.1} parent=5 // pred_fallthru
        _
    $region6: #{tpu_custom_call.1} parent=1 // loop_footer
      %s18 = sadd.s32 1, %s14
    $region7: #{tpu_custom_call.1} parent=1 // loop_footer_branch
      %13 = sbr.rel target = $region3
    $region8: #{tpu_custom_call.1} parent=1 // loop_exit
      _
    %3115 = vsyncpa [#allocation3], 1
    %s3116 = scalar_lea.sflag [#allocation3], 1
    %3117 = vsyncpa %s3116, 1
    %3118 = vsyncpa [#allocation6], 1
    %3119 = vsyncpa [#allocation4], 1
    %s3120 = scalar_lea.sflag [#allocation4], 1
    %3121 = vsyncpa %s3120, 1

</llo_original>
